<compile_context>
chip_gen: v5e
topology: v5e:2x2
jax: 0.10.0
libtpu: 0.0.40
codegen_flags: <defaults>
</compile_context>

<pallas_src>
import functools

import jax
import jax.numpy as jnp
from jax import lax
from jax.experimental import pallas as pl
from jax.experimental.pallas import tpu as pltpu


def _nmf_kernel(x_ref, dt_ref, c_ref, o_ref, *, K, eps, n, tb):
    # x_ref:  (tb, dim, n)   one slab of tb batch elements
    # dt_ref: (r, dim)       D^T, shared params
    # c_ref:  (r, n)         C,   shared params
    # o_ref:  (1, dim, tb*n) lane-packed output slab
    f32 = jnp.float32
    dt0 = dt_ref[...].astype(f32)                      # (r, dim)
    c0 = c_ref[...].astype(f32)                        # (r, n)
    xb = jnp.maximum(x_ref[...].astype(f32), 0.0)      # relu, (tb, dim, n)

    def dot_tn(a, b):  # a:(k,m), b:(k,n) -> a^T @ b : (m,n)   (MXU, trans_a)
        return lax.dot_general(a, b, (((0,), (0,)), ((), ())),
                               preferred_element_type=f32)

    def dot_nt(a, b):  # a:(m,k), b:(n,k) -> a @ b^T : (m,n)   (MXU, trans_b)
        return lax.dot_general(a, b, (((1,), (1,)), ((), ())),
                               preferred_element_type=f32)

    def dot_nn(a, b):  # plain a @ b
        return jnp.dot(a, b, preferred_element_type=f32)

    # Static unroll over the tb packed batches -> independent matmul chains.
    for t in range(tb):
        x = xb[t]                       # (dim, n)
        Dt, C = dt0, c0                 # per-batch copies of the params
        # K is small and static -> unrolled Python loop.
        for _ in range(K):
            G = dot_tn(Dt, C)           # (dim, n)  = D @ C   (reused below)
            num_c = dot_nn(Dt, x)       # (r, n)    = D^T @ x
            den_c = dot_nn(Dt, G)       # (r, n)    = D^T @ (D @ C)
            num_d = dot_nt(C, x)        # (r, dim)  = (x @ C^T)^T
            den_d = dot_nt(C, G)        # (r, dim)  = ((D @ C) @ C^T)^T
            C_new = C * (num_c / (den_c + eps))
            Dt_new = Dt * (num_d / (den_d + eps))
            C, Dt = C_new, Dt_new
        res = dot_tn(Dt, C)             # (dim, n)  = D @ C
        o_ref[0, :, t * n:(t + 1) * n] = res.astype(o_ref.dtype)


def _pick_block_b(b, max_tb=8):
    """Largest divisor of b that is <= max_tb (batches packed per grid step)."""
    tb = 1
    for cand in range(1, min(b, max_tb) + 1):
        if b % cand == 0:
            tb = cand
    return tb


def nmf_forward(x, D, C, *, K=6, eps=2e-8, block_b=None):
    b, dim, n = x.shape
    r = D.shape[1]
    tb = _pick_block_b(b) if block_b is None else block_b
    assert b % tb == 0, "block_b must divide the batch size"
    nb = b // tb
    # NOTE: on v7x (2 TensorCores) pick block_b so that nb >= 2 when possible
    # so both cores get grid work; on v5e/v6e a single big step is fine.

    Dt = D.T  # (r, dim): keep the tiny r axis on the sublane axis in-kernel.

    kernel = functools.partial(_nmf_kernel, K=K, eps=eps, n=n, tb=tb)
    flops = int(b * (10 * K + 2) * dim * r * n)
    bytes_accessed = int(4 * (2 * b * dim * n + dim * r + r * n))

    packed = pl.pallas_call(
        kernel,
        out_shape=jax.ShapeDtypeStruct((nb, dim, tb * n), x.dtype),
        grid_spec=pltpu.PrefetchScalarGridSpec(
            num_scalar_prefetch=0,
            grid=(nb,),
            in_specs=[
                pl.BlockSpec((tb, dim, n), lambda i: (i, 0, 0)),  # x slab
                pl.BlockSpec((r, dim), lambda i: (0, 0)),         # D^T shared
                pl.BlockSpec((r, n), lambda i: (0, 0)),           # C shared
            ],
            out_specs=pl.BlockSpec((1, dim, tb * n), lambda i: (i, 0, 0)),
        ),
        compiler_params=pltpu.CompilerParams(
            dimension_semantics=("parallel",)),
        cost_estimate=pl.CostEstimate(
            flops=flops, transcendentals=0, bytes_accessed=bytes_accessed),
    )(x, Dt, C)

    # Un-pack the lane-packed (dim, tb*n) slabs back to (b, dim, n).
    out = packed.reshape(nb, dim, tb, n).transpose(0, 2, 1, 3).reshape(b, dim, n)
    return out


def nmf_reference(x, D, C, *, K=6, eps=2e-8):
    # Pure-JAX reference (same math as the PyTorch module, batched).
    x = jnp.maximum(x, 0.0)
    b = x.shape[0]
    Db = jnp.broadcast_to(D[None], (b,) + D.shape)
    Cb = jnp.broadcast_to(C[None], (b,) + C.shape)
    t = lambda a: jnp.swapaxes(a, -1, -2)
    for _ in range(K):
        C_new = Cb * (t(Db) @ x / (t(Db) @ Db @ Cb + eps))
        D_new = Db * (x @ t(Cb) / (Db @ Cb @ t(Cb) + eps))
        Cb, Db = C_new, D_new
    return Db @ Cb


if __name__ == "__main__":
    key = jax.random.PRNGKey(0)
    kx, kd, kc = jax.random.split(key, 3)

    # Small shapes consistent with NMF(dim, n, ratio=8, K=6):
    b, dim, n, ratio, K, eps = 2, 64, 32, 8, 6, 2e-8
    r = dim // ratio

    x = jax.random.normal(kx, (b, dim, n), dtype=jnp.float32)
    D = jax.random.uniform(kd, (dim, r), dtype=jnp.float32)   # uniform(0, 1)
    C = jax.random.uniform(kc, (r, n), dtype=jnp.float32)     # uniform(0, 1)

    out = nmf_forward(x, D, C, K=K, eps=eps)
    out = jax.block_until_ready(out)

    ref = nmf_reference(x, D, C, K=K, eps=eps)
    assert out.shape == (b, dim, n)
    assert jnp.allclose(out, ref, rtol=1e-4, atol=1e-4), "mismatch vs reference"

    print("KERNEL_OK")
</pallas_src>

<mosaic_0001>
module attributes {stable_mosaic.version = 11 : i64} {
  func.func @_nmf_kernel(%arg0: i32, %arg1: memref<2x64x32xf32, #tpu.memory_space<vmem>>, %arg2: memref<8x64xf32, #tpu.memory_space<vmem>>, %arg3: memref<8x32xf32, #tpu.memory_space<vmem>>, %arg4: memref<1x64x64xf32, #tpu.memory_space<vmem>>) attributes {dimension_semantics = [#tpu.dimension_semantics<parallel>], iteration_bounds = array<i64: 1>, scalar_prefetch = 0 : i64, scratch_operands = 0 : i64, tpu.core_type = #tpu.core_type<tc>, window_params = [{transform_indices = @transform_0, window_bounds = array<i64: 2, 64, 32>}, {pipeline_mode = #tpu.pipeline_mode<synchronous>, transform_indices = @transform_1, window_bounds = array<i64: 8, 64>}, {pipeline_mode = #tpu.pipeline_mode<synchronous>, transform_indices = @transform_2, window_bounds = array<i64: 8, 32>}, {transform_indices = @transform_3, window_bounds = array<i64: 1, 64, 64>}]} {
    %c0 = arith.constant 0 : index
    %c0_0 = arith.constant 0 : index
    %0 = vector.load %arg2[%c0, %c0_0] : memref<8x64xf32, #tpu.memory_space<vmem>>, vector<8x64xf32>
    %c0_1 = arith.constant 0 : index
    %c0_2 = arith.constant 0 : index
    %1 = vector.load %arg3[%c0_1, %c0_2] : memref<8x32xf32, #tpu.memory_space<vmem>>, vector<8x32xf32>
    %c0_3 = arith.constant 0 : index
    %c0_4 = arith.constant 0 : index
    %c0_5 = arith.constant 0 : index
    %2 = vector.load %arg1[%c0_3, %c0_4, %c0_5] : memref<2x64x32xf32, #tpu.memory_space<vmem>>, vector<2x64x32xf32>
    %cst = arith.constant 0.000000e+00 : f32
    %3 = vector.broadcast %cst : f32 to vector<2x64x32xf32>
    %4 = arith.maximumf %2, %3 : vector<2x64x32xf32>
    %5 = vector.extract_strided_slice %4 {offsets = [0, 0, 0], sizes = [1, 64, 32], strides = [1, 1, 1]} : vector<2x64x32xf32> to vector<1x64x32xf32>
    %6 = vector.shape_cast %5 : vector<1x64x32xf32> to vector<64x32xf32>
    %cst_6 = arith.constant dense<0.000000e+00> : vector<64x32xf32>
    %7 = tpu.matmul %0, %1, %cst_6 {dimension_numbers = #tpu.dot_dimension_numbers<[0], [0], [1], [1], [0, 1, 1, 1], [], []>} : vector<8x64xf32>, vector<8x32xf32>, vector<64x32xf32> -> vector<64x32xf32>
    %cst_7 = arith.constant dense<0.000000e+00> : vector<8x32xf32>
    %8 = tpu.matmul %0, %6, %cst_7 {dimension_numbers = #tpu.dot_dimension_numbers<[1], [0], [0], [1], [0, 0, 1, 1], [], []>} : vector<8x64xf32>, vector<64x32xf32>, vector<8x32xf32> -> vector<8x32xf32>
    %cst_8 = arith.constant dense<0.000000e+00> : vector<8x32xf32>
    %9 = tpu.matmul %0, %7, %cst_8 {dimension_numbers = #tpu.dot_dimension_numbers<[1], [0], [0], [1], [0, 0, 1, 1], [], []>} : vector<8x64xf32>, vector<64x32xf32>, vector<8x32xf32> -> vector<8x32xf32>
    %cst_9 = arith.constant dense<0.000000e+00> : vector<8x64xf32>
    %10 = tpu.matmul %1, %6, %cst_9 {dimension_numbers = #tpu.dot_dimension_numbers<[1], [1], [0], [0], [0, 0, 1, 0], [], []>} : vector<8x32xf32>, vector<64x32xf32>, vector<8x64xf32> -> vector<8x64xf32>
    %cst_10 = arith.constant dense<0.000000e+00> : vector<8x64xf32>
    %11 = tpu.matmul %1, %7, %cst_10 {dimension_numbers = #tpu.dot_dimension_numbers<[1], [1], [0], [0], [0, 0, 1, 0], [], []>} : vector<8x32xf32>, vector<64x32xf32>, vector<8x64xf32> -> vector<8x64xf32>
    %cst_11 = arith.constant 2.000000e-08 : f32
    %12 = vector.broadcast %cst_11 : f32 to vector<8x32xf32>
    %13 = arith.addf %9, %12 : vector<8x32xf32>
    %14 = arith.divf %8, %13 : vector<8x32xf32>
    %15 = arith.mulf %1, %14 : vector<8x32xf32>
    %cst_12 = arith.constant 2.000000e-08 : f32
    %16 = vector.broadcast %cst_12 : f32 to vector<8x64xf32>
    %17 = arith.addf %11, %16 : vector<8x64xf32>
    %18 = arith.divf %10, %17 : vector<8x64xf32>
    %19 = arith.mulf %0, %18 : vector<8x64xf32>
    %cst_13 = arith.constant dense<0.000000e+00> : vector<64x32xf32>
    %20 = tpu.matmul %19, %15, %cst_13 {dimension_numbers = #tpu.dot_dimension_numbers<[0], [0], [1], [1], [0, 1, 1, 1], [], []>} : vector<8x64xf32>, vector<8x32xf32>, vector<64x32xf32> -> vector<64x32xf32>
    %cst_14 = arith.constant dense<0.000000e+00> : vector<8x32xf32>
    %21 = tpu.matmul %19, %6, %cst_14 {dimension_numbers = #tpu.dot_dimension_numbers<[1], [0], [0], [1], [0, 0, 1, 1], [], []>} : vector<8x64xf32>, vector<64x32xf32>, vector<8x32xf32> -> vector<8x32xf32>
    %cst_15 = arith.constant dense<0.000000e+00> : vector<8x32xf32>
    %22 = tpu.matmul %19, %20, %cst_15 {dimension_numbers = #tpu.dot_dimension_numbers<[1], [0], [0], [1], [0, 0, 1, 1], [], []>} : vector<8x64xf32>, vector<64x32xf32>, vector<8x32xf32> -> vector<8x32xf32>
    %cst_16 = arith.constant dense<0.000000e+00> : vector<8x64xf32>
    %23 = tpu.matmul %15, %6, %cst_16 {dimension_numbers = #tpu.dot_dimension_numbers<[1], [1], [0], [0], [0, 0, 1, 0], [], []>} : vector<8x32xf32>, vector<64x32xf32>, vector<8x64xf32> -> vector<8x64xf32>
    %cst_17 = arith.constant dense<0.000000e+00> : vector<8x64xf32>
    %24 = tpu.matmul %15, %20, %cst_17 {dimension_numbers = #tpu.dot_dimension_numbers<[1], [1], [0], [0], [0, 0, 1, 0], [], []>} : vector<8x32xf32>, vector<64x32xf32>, vector<8x64xf32> -> vector<8x64xf32>
    %cst_18 = arith.constant 2.000000e-08 : f32
    %25 = vector.broadcast %cst_18 : f32 to vector<8x32xf32>
    %26 = arith.addf %22, %25 : vector<8x32xf32>
    %27 = arith.divf %21, %26 : vector<8x32xf32>
    %28 = arith.mulf %15, %27 : vector<8x32xf32>
    %cst_19 = arith.constant 2.000000e-08 : f32
    %29 = vector.broadcast %cst_19 : f32 to vector<8x64xf32>
    %30 = arith.addf %24, %29 : vector<8x64xf32>
    %31 = arith.divf %23, %30 : vector<8x64xf32>
    %32 = arith.mulf %19, %31 : vector<8x64xf32>
    %cst_20 = arith.constant dense<0.000000e+00> : vector<64x32xf32>
    %33 = tpu.matmul %32, %28, %cst_20 {dimension_numbers = #tpu.dot_dimension_numbers<[0], [0], [1], [1], [0, 1, 1, 1], [], []>} : vector<8x64xf32>, vector<8x32xf32>, vector<64x32xf32> -> vector<64x32xf32>
    %cst_21 = arith.constant dense<0.000000e+00> : vector<8x32xf32>
    %34 = tpu.matmul %32, %6, %cst_21 {dimension_numbers = #tpu.dot_dimension_numbers<[1], [0], [0], [1], [0, 0, 1, 1], [], []>} : vector<8x64xf32>, vector<64x32xf32>, vector<8x32xf32> -> vector<8x32xf32>
    %cst_22 = arith.constant dense<0.000000e+00> : vector<8x32xf32>
    %35 = tpu.matmul %32, %33, %cst_22 {dimension_numbers = #tpu.dot_dimension_numbers<[1], [0], [0], [1], [0, 0, 1, 1], [], []>} : vector<8x64xf32>, vector<64x32xf32>, vector<8x32xf32> -> vector<8x32xf32>
    %cst_23 = arith.constant dense<0.000000e+00> : vector<8x64xf32>
    %36 = tpu.matmul %28, %6, %cst_23 {dimension_numbers = #tpu.dot_dimension_numbers<[1], [1], [0], [0], [0, 0, 1, 0], [], []>} : vector<8x32xf32>, vector<64x32xf32>, vector<8x64xf32> -> vector<8x64xf32>
    %cst_24 = arith.constant dense<0.000000e+00> : vector<8x64xf32>
    %37 = tpu.matmul %28, %33, %cst_24 {dimension_numbers = #tpu.dot_dimension_numbers<[1], [1], [0], [0], [0, 0, 1, 0], [], []>} : vector<8x32xf32>, vector<64x32xf32>, vector<8x64xf32> -> vector<8x64xf32>
    %cst_25 = arith.constant 2.000000e-08 : f32
    %38 = vector.broadcast %cst_25 : f32 to vector<8x32xf32>
    %39 = arith.addf %35, %38 : vector<8x32xf32>
    %40 = arith.divf %34, %39 : vector<8x32xf32>
    %41 = arith.mulf %28, %40 : vector<8x32xf32>
    %cst_26 = arith.constant 2.000000e-08 : f32
    %42 = vector.broadcast %cst_26 : f32 to vector<8x64xf32>
    %43 = arith.addf %37, %42 : vector<8x64xf32>
    %44 = arith.divf %36, %43 : vector<8x64xf32>
    %45 = arith.mulf %32, %44 : vector<8x64xf32>
    %cst_27 = arith.constant dense<0.000000e+00> : vector<64x32xf32>
    %46 = tpu.matmul %45, %41, %cst_27 {dimension_numbers = #tpu.dot_dimension_numbers<[0], [0], [1], [1], [0, 1, 1, 1], [], []>} : vector<8x64xf32>, vector<8x32xf32>, vector<64x32xf32> -> vector<64x32xf32>
    %cst_28 = arith.constant dense<0.000000e+00> : vector<8x32xf32>
    %47 = tpu.matmul %45, %6, %cst_28 {dimension_numbers = #tpu.dot_dimension_numbers<[1], [0], [0], [1], [0, 0, 1, 1], [], []>} : vector<8x64xf32>, vector<64x32xf32>, vector<8x32xf32> -> vector<8x32xf32>
    %cst_29 = arith.constant dense<0.000000e+00> : vector<8x32xf32>
    %48 = tpu.matmul %45, %46, %cst_29 {dimension_numbers = #tpu.dot_dimension_numbers<[1], [0], [0], [1], [0, 0, 1, 1], [], []>} : vector<8x64xf32>, vector<64x32xf32>, vector<8x32xf32> -> vector<8x32xf32>
    %cst_30 = arith.constant dense<0.000000e+00> : vector<8x64xf32>
    %49 = tpu.matmul %41, %6, %cst_30 {dimension_numbers = #tpu.dot_dimension_numbers<[1], [1], [0], [0], [0, 0, 1, 0], [], []>} : vector<8x32xf32>, vector<64x32xf32>, vector<8x64xf32> -> vector<8x64xf32>
    %cst_31 = arith.constant dense<0.000000e+00> : vector<8x64xf32>
    %50 = tpu.matmul %41, %46, %cst_31 {dimension_numbers = #tpu.dot_dimension_numbers<[1], [1], [0], [0], [0, 0, 1, 0], [], []>} : vector<8x32xf32>, vector<64x32xf32>, vector<8x64xf32> -> vector<8x64xf32>
    %cst_32 = arith.constant 2.000000e-08 : f32
    %51 = vector.broadcast %cst_32 : f32 to vector<8x32xf32>
    %52 = arith.addf %48, %51 : vector<8x32xf32>
    %53 = arith.divf %47, %52 : vector<8x32xf32>
    %54 = arith.mulf %41, %53 : vector<8x32xf32>
    %cst_33 = arith.constant 2.000000e-08 : f32
    %55 = vector.broadcast %cst_33 : f32 to vector<8x64xf32>
    %56 = arith.addf %50, %55 : vector<8x64xf32>
    %57 = arith.divf %49, %56 : vector<8x64xf32>
    %58 = arith.mulf %45, %57 : vector<8x64xf32>
    %cst_34 = arith.constant dense<0.000000e+00> : vector<64x32xf32>
    %59 = tpu.matmul %58, %54, %cst_34 {dimension_numbers = #tpu.dot_dimension_numbers<[0], [0], [1], [1], [0, 1, 1, 1], [], []>} : vector<8x64xf32>, vector<8x32xf32>, vector<64x32xf32> -> vector<64x32xf32>
    %cst_35 = arith.constant dense<0.000000e+00> : vector<8x32xf32>
    %60 = tpu.matmul %58, %6, %cst_35 {dimension_numbers = #tpu.dot_dimension_numbers<[1], [0], [0], [1], [0, 0, 1, 1], [], []>} : vector<8x64xf32>, vector<64x32xf32>, vector<8x32xf32> -> vector<8x32xf32>
    %cst_36 = arith.constant dense<0.000000e+00> : vector<8x32xf32>
    %61 = tpu.matmul %58, %59, %cst_36 {dimension_numbers = #tpu.dot_dimension_numbers<[1], [0], [0], [1], [0, 0, 1, 1], [], []>} : vector<8x64xf32>, vector<64x32xf32>, vector<8x32xf32> -> vector<8x32xf32>
    %cst_37 = arith.constant dense<0.000000e+00> : vector<8x64xf32>
    %62 = tpu.matmul %54, %6, %cst_37 {dimension_numbers = #tpu.dot_dimension_numbers<[1], [1], [0], [0], [0, 0, 1, 0], [], []>} : vector<8x32xf32>, vector<64x32xf32>, vector<8x64xf32> -> vector<8x64xf32>
    %cst_38 = arith.constant dense<0.000000e+00> : vector<8x64xf32>
    %63 = tpu.matmul %54, %59, %cst_38 {dimension_numbers = #tpu.dot_dimension_numbers<[1], [1], [0], [0], [0, 0, 1, 0], [], []>} : vector<8x32xf32>, vector<64x32xf32>, vector<8x64xf32> -> vector<8x64xf32>
    %cst_39 = arith.constant 2.000000e-08 : f32
    %64 = vector.broadcast %cst_39 : f32 to vector<8x32xf32>
    %65 = arith.addf %61, %64 : vector<8x32xf32>
    %66 = arith.divf %60, %65 : vector<8x32xf32>
    %67 = arith.mulf %54, %66 : vector<8x32xf32>
    %cst_40 = arith.constant 2.000000e-08 : f32
    %68 = vector.broadcast %cst_40 : f32 to vector<8x64xf32>
    %69 = arith.addf %63, %68 : vector<8x64xf32>
    %70 = arith.divf %62, %69 : vector<8x64xf32>
    %71 = arith.mulf %58, %70 : vector<8x64xf32>
    %cst_41 = arith.constant dense<0.000000e+00> : vector<64x32xf32>
    %72 = tpu.matmul %71, %67, %cst_41 {dimension_numbers = #tpu.dot_dimension_numbers<[0], [0], [1], [1], [0, 1, 1, 1], [], []>} : vector<8x64xf32>, vector<8x32xf32>, vector<64x32xf32> -> vector<64x32xf32>
    %cst_42 = arith.constant dense<0.000000e+00> : vector<8x32xf32>
    %73 = tpu.matmul %71, %6, %cst_42 {dimension_numbers = #tpu.dot_dimension_numbers<[1], [0], [0], [1], [0, 0, 1, 1], [], []>} : vector<8x64xf32>, vector<64x32xf32>, vector<8x32xf32> -> vector<8x32xf32>
    %cst_43 = arith.constant dense<0.000000e+00> : vector<8x32xf32>
    %74 = tpu.matmul %71, %72, %cst_43 {dimension_numbers = #tpu.dot_dimension_numbers<[1], [0], [0], [1], [0, 0, 1, 1], [], []>} : vector<8x64xf32>, vector<64x32xf32>, vector<8x32xf32> -> vector<8x32xf32>
    %cst_44 = arith.constant dense<0.000000e+00> : vector<8x64xf32>
    %75 = tpu.matmul %67, %6, %cst_44 {dimension_numbers = #tpu.dot_dimension_numbers<[1], [1], [0], [0], [0, 0, 1, 0], [], []>} : vector<8x32xf32>, vector<64x32xf32>, vector<8x64xf32> -> vector<8x64xf32>
    %cst_45 = arith.constant dense<0.000000e+00> : vector<8x64xf32>
    %76 = tpu.matmul %67, %72, %cst_45 {dimension_numbers = #tpu.dot_dimension_numbers<[1], [1], [0], [0], [0, 0, 1, 0], [], []>} : vector<8x32xf32>, vector<64x32xf32>, vector<8x64xf32> -> vector<8x64xf32>
    %cst_46 = arith.constant 2.000000e-08 : f32
    %77 = vector.broadcast %cst_46 : f32 to vector<8x32xf32>
    %78 = arith.addf %74, %77 : vector<8x32xf32>
    %79 = arith.divf %73, %78 : vector<8x32xf32>
    %80 = arith.mulf %67, %79 : vector<8x32xf32>
    %cst_47 = arith.constant 2.000000e-08 : f32
    %81 = vector.broadcast %cst_47 : f32 to vector<8x64xf32>
    %82 = arith.addf %76, %81 : vector<8x64xf32>
    %83 = arith.divf %75, %82 : vector<8x64xf32>
    %84 = arith.mulf %71, %83 : vector<8x64xf32>
    %cst_48 = arith.constant dense<0.000000e+00> : vector<64x32xf32>
    %85 = tpu.matmul %84, %80, %cst_48 {dimension_numbers = #tpu.dot_dimension_numbers<[0], [0], [1], [1], [0, 1, 1, 1], [], []>} : vector<8x64xf32>, vector<8x32xf32>, vector<64x32xf32> -> vector<64x32xf32>
    %c0_49 = arith.constant 0 : index
    %c0_50 = arith.constant 0 : index
    %c0_51 = arith.constant 0 : index
    %86 = vector.load %arg4[%c0_49, %c0_50, %c0_51] : memref<1x64x64xf32, #tpu.memory_space<vmem>>, vector<1x64x32xf32>
    %87 = vector.shape_cast %86 : vector<1x64x32xf32> to vector<64x32xf32>
    %88 = vector.shape_cast %85 : vector<64x32xf32> to vector<1x64x32xf32>
    tpu.vector_store %arg4[%c0_49, %c0_50, %c0_51], %88 {strides = array<i32>} : memref<1x64x64xf32, #tpu.memory_space<vmem>>, vector<1x64x32xf32>,
    %89 = vector.extract_strided_slice %4 {offsets = [1, 0, 0], sizes = [1, 64, 32], strides = [1, 1, 1]} : vector<2x64x32xf32> to vector<1x64x32xf32>
    %90 = vector.shape_cast %89 : vector<1x64x32xf32> to vector<64x32xf32>
    %cst_52 = arith.constant dense<0.000000e+00> : vector<64x32xf32>
    %91 = tpu.matmul %0, %1, %cst_52 {dimension_numbers = #tpu.dot_dimension_numbers<[0], [0], [1], [1], [0, 1, 1, 1], [], []>} : vector<8x64xf32>, vector<8x32xf32>, vector<64x32xf32> -> vector<64x32xf32>
    %cst_53 = arith.constant dense<0.000000e+00> : vector<8x32xf32>
    %92 = tpu.matmul %0, %90, %cst_53 {dimension_numbers = #tpu.dot_dimension_numbers<[1], [0], [0], [1], [0, 0, 1, 1], [], []>} : vector<8x64xf32>, vector<64x32xf32>, vector<8x32xf32> -> vector<8x32xf32>
    %cst_54 = arith.constant dense<0.000000e+00> : vector<8x32xf32>
    %93 = tpu.matmul %0, %91, %cst_54 {dimension_numbers = #tpu.dot_dimension_numbers<[1], [0], [0], [1], [0, 0, 1, 1], [], []>} : vector<8x64xf32>, vector<64x32xf32>, vector<8x32xf32> -> vector<8x32xf32>
    %cst_55 = arith.constant dense<0.000000e+00> : vector<8x64xf32>
    %94 = tpu.matmul %1, %90, %cst_55 {dimension_numbers = #tpu.dot_dimension_numbers<[1], [1], [0], [0], [0, 0, 1, 0], [], []>} : vector<8x32xf32>, vector<64x32xf32>, vector<8x64xf32> -> vector<8x64xf32>
    %cst_56 = arith.constant dense<0.000000e+00> : vector<8x64xf32>
    %95 = tpu.matmul %1, %91, %cst_56 {dimension_numbers = #tpu.dot_dimension_numbers<[1], [1], [0], [0], [0, 0, 1, 0], [], []>} : vector<8x32xf32>, vector<64x32xf32>, vector<8x64xf32> -> vector<8x64xf32>
    %cst_57 = arith.constant 2.000000e-08 : f32
    %96 = vector.broadcast %cst_57 : f32 to vector<8x32xf32>
    %97 = arith.addf %93, %96 : vector<8x32xf32>
    %98 = arith.divf %92, %97 : vector<8x32xf32>
    %99 = arith.mulf %1, %98 : vector<8x32xf32>
    %cst_58 = arith.constant 2.000000e-08 : f32
    %100 = vector.broadcast %cst_58 : f32 to vector<8x64xf32>
    %101 = arith.addf %95, %100 : vector<8x64xf32>
    %102 = arith.divf %94, %101 : vector<8x64xf32>
    %103 = arith.mulf %0, %102 : vector<8x64xf32>
    %cst_59 = arith.constant dense<0.000000e+00> : vector<64x32xf32>
    %104 = tpu.matmul %103, %99, %cst_59 {dimension_numbers = #tpu.dot_dimension_numbers<[0], [0], [1], [1], [0, 1, 1, 1], [], []>} : vector<8x64xf32>, vector<8x32xf32>, vector<64x32xf32> -> vector<64x32xf32>
    %cst_60 = arith.constant dense<0.000000e+00> : vector<8x32xf32>
    %105 = tpu.matmul %103, %90, %cst_60 {dimension_numbers = #tpu.dot_dimension_numbers<[1], [0], [0], [1], [0, 0, 1, 1], [], []>} : vector<8x64xf32>, vector<64x32xf32>, vector<8x32xf32> -> vector<8x32xf32>
    %cst_61 = arith.constant dense<0.000000e+00> : vector<8x32xf32>
    %106 = tpu.matmul %103, %104, %cst_61 {dimension_numbers = #tpu.dot_dimension_numbers<[1], [0], [0], [1], [0, 0, 1, 1], [], []>} : vector<8x64xf32>, vector<64x32xf32>, vector<8x32xf32> -> vector<8x32xf32>
    %cst_62 = arith.constant dense<0.000000e+00> : vector<8x64xf32>
    %107 = tpu.matmul %99, %90, %cst_62 {dimension_numbers = #tpu.dot_dimension_numbers<[1], [1], [0], [0], [0, 0, 1, 0], [], []>} : vector<8x32xf32>, vector<64x32xf32>, vector<8x64xf32> -> vector<8x64xf32>
    %cst_63 = arith.constant dense<0.000000e+00> : vector<8x64xf32>
    %108 = tpu.matmul %99, %104, %cst_63 {dimension_numbers = #tpu.dot_dimension_numbers<[1], [1], [0], [0], [0, 0, 1, 0], [], []>} : vector<8x32xf32>, vector<64x32xf32>, vector<8x64xf32> -> vector<8x64xf32>
    %cst_64 = arith.constant 2.000000e-08 : f32
    %109 = vector.broadcast %cst_64 : f32 to vector<8x32xf32>
    %110 = arith.addf %106, %109 : vector<8x32xf32>
    %111 = arith.divf %105, %110 : vector<8x32xf32>
    %112 = arith.mulf %99, %111 : vector<8x32xf32>
    %cst_65 = arith.constant 2.000000e-08 : f32
    %113 = vector.broadcast %cst_65 : f32 to vector<8x64xf32>
    %114 = arith.addf %108, %113 : vector<8x64xf32>
    %115 = arith.divf %107, %114 : vector<8x64xf32>
    %116 = arith.mulf %103, %115 : vector<8x64xf32>
    %cst_66 = arith.constant dense<0.000000e+00> : vector<64x32xf32>
    %117 = tpu.matmul %116, %112, %cst_66 {dimension_numbers = #tpu.dot_dimension_numbers<[0], [0], [1], [1], [0, 1, 1, 1], [], []>} : vector<8x64xf32>, vector<8x32xf32>, vector<64x32xf32> -> vector<64x32xf32>
    %cst_67 = arith.constant dense<0.000000e+00> : vector<8x32xf32>
    %118 = tpu.matmul %116, %90, %cst_67 {dimension_numbers = #tpu.dot_dimension_numbers<[1], [0], [0], [1], [0, 0, 1, 1], [], []>} : vector<8x64xf32>, vector<64x32xf32>, vector<8x32xf32> -> vector<8x32xf32>
    %cst_68 = arith.constant dense<0.000000e+00> : vector<8x32xf32>
    %119 = tpu.matmul %116, %117, %cst_68 {dimension_numbers = #tpu.dot_dimension_numbers<[1], [0], [0], [1], [0, 0, 1, 1], [], []>} : vector<8x64xf32>, vector<64x32xf32>, vector<8x32xf32> -> vector<8x32xf32>
    %cst_69 = arith.constant dense<0.000000e+00> : vector<8x64xf32>
    %120 = tpu.matmul %112, %90, %cst_69 {dimension_numbers = #tpu.dot_dimension_numbers<[1], [1], [0], [0], [0, 0, 1, 0], [], []>} : vector<8x32xf32>, vector<64x32xf32>, vector<8x64xf32> -> vector<8x64xf32>
    %cst_70 = arith.constant dense<0.000000e+00> : vector<8x64xf32>
    %121 = tpu.matmul %112, %117, %cst_70 {dimension_numbers = #tpu.dot_dimension_numbers<[1], [1], [0], [0], [0, 0, 1, 0], [], []>} : vector<8x32xf32>, vector<64x32xf32>, vector<8x64xf32> -> vector<8x64xf32>
    %cst_71 = arith.constant 2.000000e-08 : f32
    %122 = vector.broadcast %cst_71 : f32 to vector<8x32xf32>
    %123 = arith.addf %119, %122 : vector<8x32xf32>
    %124 = arith.divf %118, %123 : vector<8x32xf32>
    %125 = arith.mulf %112, %124 : vector<8x32xf32>
    %cst_72 = arith.constant 2.000000e-08 : f32
    %126 = vector.broadcast %cst_72 : f32 to vector<8x64xf32>
    %127 = arith.addf %121, %126 : vector<8x64xf32>
    %128 = arith.divf %120, %127 : vector<8x64xf32>
    %129 = arith.mulf %116, %128 : vector<8x64xf32>
    %cst_73 = arith.constant dense<0.000000e+00> : vector<64x32xf32>
    %130 = tpu.matmul %129, %125, %cst_73 {dimension_numbers = #tpu.dot_dimension_numbers<[0], [0], [1], [1], [0, 1, 1, 1], [], []>} : vector<8x64xf32>, vector<8x32xf32>, vector<64x32xf32> -> vector<64x32xf32>
    %cst_74 = arith.constant dense<0.000000e+00> : vector<8x32xf32>
    %131 = tpu.matmul %129, %90, %cst_74 {dimension_numbers = #tpu.dot_dimension_numbers<[1], [0], [0], [1], [0, 0, 1, 1], [], []>} : vector<8x64xf32>, vector<64x32xf32>, vector<8x32xf32> -> vector<8x32xf32>
    %cst_75 = arith.constant dense<0.000000e+00> : vector<8x32xf32>
    %132 = tpu.matmul %129, %130, %cst_75 {dimension_numbers = #tpu.dot_dimension_numbers<[1], [0], [0], [1], [0, 0, 1, 1], [], []>} : vector<8x64xf32>, vector<64x32xf32>, vector<8x32xf32> -> vector<8x32xf32>
    %cst_76 = arith.constant dense<0.000000e+00> : vector<8x64xf32>
    %133 = tpu.matmul %125, %90, %cst_76 {dimension_numbers = #tpu.dot_dimension_numbers<[1], [1], [0], [0], [0, 0, 1, 0], [], []>} : vector<8x32xf32>, vector<64x32xf32>, vector<8x64xf32> -> vector<8x64xf32>
    %cst_77 = arith.constant dense<0.000000e+00> : vector<8x64xf32>
    %134 = tpu.matmul %125, %130, %cst_77 {dimension_numbers = #tpu.dot_dimension_numbers<[1], [1], [0], [0], [0, 0, 1, 0], [], []>} : vector<8x32xf32>, vector<64x32xf32>, vector<8x64xf32> -> vector<8x64xf32>
    %cst_78 = arith.constant 2.000000e-08 : f32
    %135 = vector.broadcast %cst_78 : f32 to vector<8x32xf32>
    %136 = arith.addf %132, %135 : vector<8x32xf32>
    %137 = arith.divf %131, %136 : vector<8x32xf32>
    %138 = arith.mulf %125, %137 : vector<8x32xf32>
    %cst_79 = arith.constant 2.000000e-08 : f32
    %139 = vector.broadcast %cst_79 : f32 to vector<8x64xf32>
    %140 = arith.addf %134, %139 : vector<8x64xf32>
    %141 = arith.divf %133, %140 : vector<8x64xf32>
    %142 = arith.mulf %129, %141 : vector<8x64xf32>
    %cst_80 = arith.constant dense<0.000000e+00> : vector<64x32xf32>
    %143 = tpu.matmul %142, %138, %cst_80 {dimension_numbers = #tpu.dot_dimension_numbers<[0], [0], [1], [1], [0, 1, 1, 1], [], []>} : vector<8x64xf32>, vector<8x32xf32>, vector<64x32xf32> -> vector<64x32xf32>
    %cst_81 = arith.constant dense<0.000000e+00> : vector<8x32xf32>
    %144 = tpu.matmul %142, %90, %cst_81 {dimension_numbers = #tpu.dot_dimension_numbers<[1], [0], [0], [1], [0, 0, 1, 1], [], []>} : vector<8x64xf32>, vector<64x32xf32>, vector<8x32xf32> -> vector<8x32xf32>
    %cst_82 = arith.constant dense<0.000000e+00> : vector<8x32xf32>
    %145 = tpu.matmul %142, %143, %cst_82 {dimension_numbers = #tpu.dot_dimension_numbers<[1], [0], [0], [1], [0, 0, 1, 1], [], []>} : vector<8x64xf32>, vector<64x32xf32>, vector<8x32xf32> -> vector<8x32xf32>
    %cst_83 = arith.constant dense<0.000000e+00> : vector<8x64xf32>
    %146 = tpu.matmul %138, %90, %cst_83 {dimension_numbers = #tpu.dot_dimension_numbers<[1], [1], [0], [0], [0, 0, 1, 0], [], []>} : vector<8x32xf32>, vector<64x32xf32>, vector<8x64xf32> -> vector<8x64xf32>
    %cst_84 = arith.constant dense<0.000000e+00> : vector<8x64xf32>
    %147 = tpu.matmul %138, %143, %cst_84 {dimension_numbers = #tpu.dot_dimension_numbers<[1], [1], [0], [0], [0, 0, 1, 0], [], []>} : vector<8x32xf32>, vector<64x32xf32>, vector<8x64xf32> -> vector<8x64xf32>
    %cst_85 = arith.constant 2.000000e-08 : f32
    %148 = vector.broadcast %cst_85 : f32 to vector<8x32xf32>
    %149 = arith.addf %145, %148 : vector<8x32xf32>
    %150 = arith.divf %144, %149 : vector<8x32xf32>
    %151 = arith.mulf %138, %150 : vector<8x32xf32>
    %cst_86 = arith.constant 2.000000e-08 : f32
    %152 = vector.broadcast %cst_86 : f32 to vector<8x64xf32>
    %153 = arith.addf %147, %152 : vector<8x64xf32>
    %154 = arith.divf %146, %153 : vector<8x64xf32>
    %155 = arith.mulf %142, %154 : vector<8x64xf32>
    %cst_87 = arith.constant dense<0.000000e+00> : vector<64x32xf32>
    %156 = tpu.matmul %155, %151, %cst_87 {dimension_numbers = #tpu.dot_dimension_numbers<[0], [0], [1], [1], [0, 1, 1, 1], [], []>} : vector<8x64xf32>, vector<8x32xf32>, vector<64x32xf32> -> vector<64x32xf32>
    %cst_88 = arith.constant dense<0.000000e+00> : vector<8x32xf32>
    %157 = tpu.matmul %155, %90, %cst_88 {dimension_numbers = #tpu.dot_dimension_numbers<[1], [0], [0], [1], [0, 0, 1, 1], [], []>} : vector<8x64xf32>, vector<64x32xf32>, vector<8x32xf32> -> vector<8x32xf32>
    %cst_89 = arith.constant dense<0.000000e+00> : vector<8x32xf32>
    %158 = tpu.matmul %155, %156, %cst_89 {dimension_numbers = #tpu.dot_dimension_numbers<[1], [0], [0], [1], [0, 0, 1, 1], [], []>} : vector<8x64xf32>, vector<64x32xf32>, vector<8x32xf32> -> vector<8x32xf32>
    %cst_90 = arith.constant dense<0.000000e+00> : vector<8x64xf32>
    %159 = tpu.matmul %151, %90, %cst_90 {dimension_numbers = #tpu.dot_dimension_numbers<[1], [1], [0], [0], [0, 0, 1, 0], [], []>} : vector<8x32xf32>, vector<64x32xf32>, vector<8x64xf32> -> vector<8x64xf32>
    %cst_91 = arith.constant dense<0.000000e+00> : vector<8x64xf32>
    %160 = tpu.matmul %151, %156, %cst_91 {dimension_numbers = #tpu.dot_dimension_numbers<[1], [1], [0], [0], [0, 0, 1, 0], [], []>} : vector<8x32xf32>, vector<64x32xf32>, vector<8x64xf32> -> vector<8x64xf32>
    %cst_92 = arith.constant 2.000000e-08 : f32
    %161 = vector.broadcast %cst_92 : f32 to vector<8x32xf32>
    %162 = arith.addf %158, %161 : vector<8x32xf32>
    %163 = arith.divf %157, %162 : vector<8x32xf32>
    %164 = arith.mulf %151, %163 : vector<8x32xf32>
    %cst_93 = arith.constant 2.000000e-08 : f32
    %165 = vector.broadcast %cst_93 : f32 to vector<8x64xf32>
    %166 = arith.addf %160, %165 : vector<8x64xf32>
    %167 = arith.divf %159, %166 : vector<8x64xf32>
    %168 = arith.mulf %155, %167 : vector<8x64xf32>
    %cst_94 = arith.constant dense<0.000000e+00> : vector<64x32xf32>
    %169 = tpu.matmul %168, %164, %cst_94 {dimension_numbers = #tpu.dot_dimension_numbers<[0], [0], [1], [1], [0, 1, 1, 1], [], []>} : vector<8x64xf32>, vector<8x32xf32>, vector<64x32xf32> -> vector<64x32xf32>
    %c0_95 = arith.constant 0 : index
    %c0_96 = arith.constant 0 : index
    %c32 = arith.constant 32 : index
    %170 = vector.load %arg4[%c0_95, %c0_96, %c32] : memref<1x64x64xf32, #tpu.memory_space<vmem>>, vector<1x64x32xf32>
    %171 = vector.shape_cast %170 : vector<1x64x32xf32> to vector<64x32xf32>
    %172 = vector.shape_cast %169 : vector<64x32xf32> to vector<1x64x32xf32>
    tpu.vector_store %arg4[%c0_95, %c0_96, %c32], %172 {strides = array<i32>} : memref<1x64x64xf32, #tpu.memory_space<vmem>>, vector<1x64x32xf32>,
    return
  }
  func.func @transform_0(%arg0: i32) -> (i32, i32, i32) {
    %c0_i32 = arith.constant 0 : i32
    %c0_i32_0 = arith.constant 0 : i32
    %c0_i32_1 = arith.constant 0 : i32
    return %arg0, %c0_i32, %c0_i32_0 : i32, i32, i32
  }
  func.func @transform_1(%arg0: i32) -> (i32, i32) {
    %c0_i32 = arith.constant 0 : i32
    %c0_i32_0 = arith.constant 0 : i32
    %c0_i32_1 = arith.constant 0 : i32
    return %c0_i32, %c0_i32_0 : i32, i32
  }
  func.func @transform_2(%arg0: i32) -> (i32, i32) {
    %c0_i32 = arith.constant 0 : i32
    %c0_i32_0 = arith.constant 0 : i32
    %c0_i32_1 = arith.constant 0 : i32
    return %c0_i32, %c0_i32_0 : i32, i32
  }
  func.func @transform_3(%arg0: i32) -> (i32, i32, i32) {
    %c0_i32 = arith.constant 0 : i32
    %c0_i32_0 = arith.constant 0 : i32
    %c0_i32_1 = arith.constant 0 : i32
    return %arg0, %c0_i32, %c0_i32_0 : i32, i32, i32
  }
}

</mosaic_0001>

<llo_original>
// kernel: tpu_custom_call.1
$region0: #{tpu_custom_call.1}
  #allocation0 [shape = 'u32[]', space=smem, size = 0x4, offset = 0x4, fixed_abs, tag = 'smem constant byte address 0x4 - core index']
  #allocation1 [shape = 'u32[72,128]{1,0:T(1,128)}', space=vmem, size = 0x9000, scoped, tag = 'internal scratch']
  %s0 = inlined_call_operand.vmem [shape: f32[2,64,32], index: 0, kind: input, shape index: {}]
  %s1 = inlined_call_operand.vmem [shape: f32[8,64], index: 1, kind: input, shape index: {}]
  %s2 = inlined_call_operand.vmem [shape: f32[8,32], index: 2, kind: input, shape index: {}]
  %s3 = inlined_call_operand.hbm [shape: f32[1,64,64], index: 3, kind: output, shape index: {}]
  %s4 = sld [smem:[#allocation0]]
  $region22: #{tpu_custom_call.1} parent=0
    _
  %s6 = ssub.s32 1, %s4
  %s7 = scalar_select 0, %s6, %s4
  $region1: #{tpu_custom_call.1} parent=0
    #allocation2 [shape = 'u8[32768]{0}', space=vmem, size = 0x8000, scoped, tag = 'output window, operand 0, single buffered']
    #allocation3 [shape = 's32[1]{0}', space=sflag, size = 0x4, scoped, tag = 'scoped memory for tpu_custom_call.1']
    %8 = vsyncpa [#allocation3], 0
    // Predicated region
    $region2: #{tpu_custom_call.1} parent=1 // pred_check
      _
    $region3: #{tpu_custom_call.1} parent=1 // pred_check_branch
      %10 = sbr.rel (0) target = $region5
    $region4: #{tpu_custom_call.1} parent=1 // pred_region
      _
    $region5: #{tpu_custom_call.1} parent=1 // pred_fallthru
      _
    // Predicated region
    $region6: #{tpu_custom_call.1} parent=1 // pred_check
      _
    $region7: #{tpu_custom_call.1} parent=1 // pred_check_branch
      %12 = sbr.rel (0) target = $region9
    $region8: #{tpu_custom_call.1} parent=1 // pred_region
      _
    $region9: #{tpu_custom_call.1} parent=1 // pred_fallthru
      _
    // Predicated region
    $region10: #{tpu_custom_call.1} parent=1 // pred_check
      _
    $region11: #{tpu_custom_call.1} parent=1 // pred_check_branch
      %14 = sbr.rel (0) target = $region13
    $region12: #{tpu_custom_call.1} parent=1 // pred_region
      _
    $region13: #{tpu_custom_call.1} parent=1 // pred_fallthru
      _
    %v15 = vld [vmem:[%s1] sm:$0xff]
    %v16 = vld [vmem:[%s2] sm:$0xff]
    %v17 = vld [vmem:[%s0] sm:$0xff]
    %v18 = vld [vmem:[%s0 + $0x8] sm:$0xff]
    %v19 = vld [vmem:[%s0 + $0x10] sm:$0xff]
    %v20 = vld [vmem:[%s0 + $0x18] sm:$0xff]
    %v21 = vld [vmem:[%s0 + $0x20] sm:$0xff]
    %v22 = vld [vmem:[%s0 + $0x28] sm:$0xff]
    %v23 = vld [vmem:[%s0 + $0x30] sm:$0xff]
    %v24 = vld [vmem:[%s0 + $0x38] sm:$0xff]
    %v25 = vld [vmem:[%s0 + $0x40] sm:$0xff]
    %v26 = vld [vmem:[%s0 + $0x48] sm:$0xff]
    %v27 = vld [vmem:[%s0 + $0x50] sm:$0xff]
    %v28 = vld [vmem:[%s0 + $0x58] sm:$0xff]
    %v29 = vld [vmem:[%s0 + $0x60] sm:$0xff]
    %v30 = vld [vmem:[%s0 + $0x68] sm:$0xff]
    %v31 = vld [vmem:[%s0 + $0x70] sm:$0xff]
    %v32 = vld [vmem:[%s0 + $0x78] sm:$0xff]
    %v33 = vmax.f32 %v17, 0.0
    %v34 = vmax.f32 %v18, 0.0
    %v35 = vmax.f32 %v19, 0.0
    %v36 = vmax.f32 %v20, 0.0
    %v37 = vmax.f32 %v21, 0.0
    %v38 = vmax.f32 %v22, 0.0
    %v39 = vmax.f32 %v23, 0.0
    %v40 = vmax.f32 %v24, 0.0
    %v41 = vmax.f32 %v25, 0.0
    %v42 = vmax.f32 %v26, 0.0
    %v43 = vmax.f32 %v27, 0.0
    %v44 = vmax.f32 %v28, 0.0
    %v45 = vmax.f32 %v29, 0.0
    %v46 = vmax.f32 %v30, 0.0
    %v47 = vmax.f32 %v31, 0.0
    %v48 = vmax.f32 %v32, 0.0
    %49 = vxpose.xlu0.b32.start [1/16] %v15, 128
    %50 = vxpose.xlu0.b32.cont [2/16] 0.0, 128
    %51 = vxpose.xlu0.b32.cont [3/16] 0.0, 128
    %52 = vxpose.xlu0.b32.cont [4/16] 0.0, 128
    %53 = vxpose.xlu0.b32.cont [5/16] 0.0, 128
    %54 = vxpose.xlu0.b32.cont [6/16] 0.0, 128
    %55 = vxpose.xlu0.b32.cont [7/16] 0.0, 128
    %56 = vxpose.xlu0.b32.cont [8/16] 0.0, 128
    %57 = vxpose.xlu0.b32.cont [9/16] 0.0, 128
    %58 = vxpose.xlu0.b32.cont [10/16] 0.0, 128
    %59 = vxpose.xlu0.b32.cont [11/16] 0.0, 128
    %60 = vxpose.xlu0.b32.cont [12/16] 0.0, 128
    %61 = vxpose.xlu0.b32.cont [13/16] 0.0, 128
    %62 = vxpose.xlu0.b32.cont [14/16] 0.0, 128
    %63 = vxpose.xlu0.b32.cont [15/16] 0.0, 128
    %64 = vxpose.xlu0.b32.end [16/16] 0.0, 128
    %v65 = vpop.trf.xlu0
    %v66 = vpop.trf.xlu0
    %v67 = vpop.trf.xlu0
    %v68 = vpop.trf.xlu0
    %v69 = vpop.trf.xlu0
    %v70 = vpop.trf.xlu0
    %v71 = vpop.trf.xlu0
    %v72 = vpop.trf.xlu0
    %v73 = vpop.trf.xlu0
    %v74 = vpop.trf.xlu0
    %v75 = vpop.trf.xlu0
    %v76 = vpop.trf.xlu0
    %v77 = vpop.trf.xlu0
    %v78 = vpop.trf.xlu0
    %v79 = vpop.trf.xlu0
    %v80 = vpop.trf.xlu0
    %vm81 = vcmask 64512
    %v83 = vsel %vm81, %v65, 0
    %v86 = vsel %vm81, %v66, 0
    %v89 = vsel %vm81, %v67, 0
    %v92 = vsel %vm81, %v68, 0
    %v95 = vsel %vm81, %v69, 0
    %v98 = vsel %vm81, %v70, 0
    %v101 = vsel %vm81, %v71, 0
    %v104 = vsel %vm81, %v72, 0
    %106 = vmatpush.msra.mxu0 0.0
    %107 = vmatpush.msra.mxu0 0.0
    %108 = vmatpush.msra.mxu0 0.0
    %109 = vmatpush.msra.mxu0 0.0
    %110 = vmatpush.msra.mxu0 0.0
    %111 = vmatpush.msra.mxu0 0.0
    %112 = vmatpush.msra.mxu0 0.0
    %113 = vmatpush.msra.mxu0 0.0
    %114 = vmatpush.msra.mxu0 0.0
    %115 = vmatpush.msra.mxu0 0.0
    %116 = vmatpush.msra.mxu0 0.0
    %117 = vmatpush.msra.mxu0 0.0
    %118 = vmatpush.msra.mxu0 0.0
    %119 = vmatpush.msra.mxu0 0.0
    %120 = vmatpush.msra.mxu0 0.0
    %121 = vmatpush.msra.mxu0 %v16
    %122 = vmatmul.f32.gmra.mxu0 %v83
    %v123 = vpop.f32.mrf.mxu0
    %v124 = vadd.f32 0.0, %v123
    %125 = vmatmul.f32.gmra.mxu0 %v86
    %v126 = vpop.f32.mrf.mxu0
    %v127 = vadd.f32 0.0, %v126
    %128 = vmatmul.f32.gmra.mxu0 %v89
    %v129 = vpop.f32.mrf.mxu0
    %v130 = vadd.f32 0.0, %v129
    %131 = vmatmul.f32.gmra.mxu0 %v92
    %v132 = vpop.f32.mrf.mxu0
    %v133 = vadd.f32 0.0, %v132
    %134 = vmatmul.f32.gmra.mxu0 %v95
    %v135 = vpop.f32.mrf.mxu0
    %v136 = vadd.f32 0.0, %v135
    %137 = vmatmul.f32.gmra.mxu0 %v98
    %v138 = vpop.f32.mrf.mxu0
    %v139 = vadd.f32 0.0, %v138
    %140 = vmatmul.f32.gmra.mxu0 %v101
    %v141 = vpop.f32.mrf.mxu0
    %v142 = vadd.f32 0.0, %v141
    %143 = vmatmul.f32.gmra.mxu0 %v104
    %v144 = vpop.f32.mrf.mxu0
    %v145 = vadd.f32 0.0, %v144
    %146 = vdwg.mxu0
    %vm147 = vcmask 523264
    %v149 = vsel %vm147, %v15, 0
    %151 = vmatpush.msra.mxu0 0.0
    %152 = vmatpush.msra.mxu0 0.0
    %153 = vmatpush.msra.mxu0 0.0
    %154 = vmatpush.msra.mxu0 0.0
    %155 = vmatpush.msra.mxu0 0.0
    %156 = vmatpush.msra.mxu0 0.0
    %157 = vmatpush.msra.mxu0 0.0
    %158 = vmatpush.msra.mxu0 0.0
    %159 = vmatpush.msra.mxu0 %v40
    %160 = vmatpush.msra.mxu0 %v39
    %161 = vmatpush.msra.mxu0 %v38
    %162 = vmatpush.msra.mxu0 %v37
    %163 = vmatpush.msra.mxu0 %v36
    %164 = vmatpush.msra.mxu0 %v35
    %165 = vmatpush.msra.mxu0 %v34
    %166 = vmatpush.msra.mxu0 %v33
    %167 = vmatmul.f32.gmra.mxu0 %v149
    %v168 = vpop.f32.mrf.mxu0
    %v169 = vadd.f32 0.0, %v168
    %170 = vdwg.mxu0
    %vm171 = vcmask 261120
    %v173 = vsel %vm171, %v16, 0
    %v176 = vsel %vm171, %v33, 0
    %v179 = vsel %vm171, %v34, 0
    %v182 = vsel %vm171, %v35, 0
    %v185 = vsel %vm171, %v36, 0
    %v188 = vsel %vm171, %v37, 0
    %v191 = vsel %vm171, %v38, 0
    %v194 = vsel %vm171, %v39, 0
    %v197 = vsel %vm171, %v40, 0
    %199 = vmatpush.xpose.msra.mxu0 0.0
    %200 = vmatpush.xpose.msra.mxu0 0.0
    %201 = vmatpush.xpose.msra.mxu0 0.0
    %202 = vmatpush.xpose.msra.mxu0 0.0
    %203 = vmatpush.xpose.msra.mxu0 0.0
    %204 = vmatpush.xpose.msra.mxu0 0.0
    %205 = vmatpush.xpose.msra.mxu0 0.0
    %206 = vmatpush.xpose.msra.mxu0 0.0
    %207 = vmatpush.xpose.msra.mxu0 %v197
    %208 = vmatpush.xpose.msra.mxu0 %v194
    %209 = vmatpush.xpose.msra.mxu0 %v191
    %210 = vmatpush.xpose.msra.mxu0 %v188
    %211 = vmatpush.xpose.msra.mxu0 %v185
    %212 = vmatpush.xpose.msra.mxu0 %v182
    %213 = vmatpush.xpose.msra.mxu0 %v179
    %214 = vmatpush.xpose.msra.mxu0 %v176
    %215 = vmatmul.f32.gmra.mxu0 %v173
    %v216 = vpop.f32.mrf.mxu0
    %v217 = vadd.f32 0.0, %v216
    %218 = vdwg.mxu0
    %219 = vmatpush.msra.mxu0 0.0
    %220 = vmatpush.msra.mxu0 0.0
    %221 = vmatpush.msra.mxu0 0.0
    %222 = vmatpush.msra.mxu0 0.0
    %223 = vmatpush.msra.mxu0 0.0
    %224 = vmatpush.msra.mxu0 0.0
    %225 = vmatpush.msra.mxu0 0.0
    %226 = vmatpush.msra.mxu0 0.0
    %227 = vmatpush.msra.mxu0 %v145
    %228 = vmatpush.msra.mxu0 %v142
    %229 = vmatpush.msra.mxu0 %v139
    %230 = vmatpush.msra.mxu0 %v136
    %231 = vmatpush.msra.mxu0 %v133
    %232 = vmatpush.msra.mxu0 %v130
    %233 = vmatpush.msra.mxu0 %v127
    %234 = vmatpush.msra.mxu0 %v124
    %235 = vmatmul.f32.gmra.mxu0 %v149
    %v236 = vpop.f32.mrf.mxu0
    %v237 = vadd.f32 2e-08, %v236
    %238 = vdwg.mxu0
    %v239 = vrcp.pop %v237
    %v240 = vmul.f32 %v237, %v239
    %v241 = vsub.f32 1.0, %v240
    %v242 = vmul.f32 %v239, %v241
    %v243 = vadd.f32 %v239, %v242
    %vm244 = vweird.f32 %v237
    %vm245 = vweird.f32 %v239
    %vm246 = vmor %vm244, %vm245
    %v247 = vsel %vm246, %v239, %v243
    %v248 = vand.u32 2147483647, %v237
    %vm249 = vcmp.eq.f32.partialorder %v248, 8.507059e+37
    %v250 = vand.u32 %v237, 2147483648
    %v251 = vor.u32 1.1754944e-38, %v250
    %v252 = vsel %vm249, %v251, %v247
    %v253 = vmul.f32 %v169, %v252
    %v254 = vmul.f32 %v16, %v253
    %v256 = vsel %vm171, %v124, 0
    %v259 = vsel %vm171, %v127, 0
    %v262 = vsel %vm171, %v130, 0
    %v265 = vsel %vm171, %v133, 0
    %v268 = vsel %vm171, %v136, 0
    %v271 = vsel %vm171, %v139, 0
    %v274 = vsel %vm171, %v142, 0
    %v277 = vsel %vm171, %v145, 0
    %279 = vmatpush.xpose.msra.mxu0 0.0
    %280 = vmatpush.xpose.msra.mxu0 0.0
    %281 = vmatpush.xpose.msra.mxu0 0.0
    %282 = vmatpush.xpose.msra.mxu0 0.0
    %283 = vmatpush.xpose.msra.mxu0 0.0
    %284 = vmatpush.xpose.msra.mxu0 0.0
    %285 = vmatpush.xpose.msra.mxu0 0.0
    %286 = vmatpush.xpose.msra.mxu0 0.0
    %287 = vmatpush.xpose.msra.mxu0 %v277
    %288 = vmatpush.xpose.msra.mxu0 %v274
    %289 = vmatpush.xpose.msra.mxu0 %v271
    %290 = vmatpush.xpose.msra.mxu0 %v268
    %291 = vmatpush.xpose.msra.mxu0 %v265
    %292 = vmatpush.xpose.msra.mxu0 %v262
    %293 = vmatpush.xpose.msra.mxu0 %v259
    %294 = vmatpush.xpose.msra.mxu0 %v256
    %295 = vmatmul.f32.gmra.mxu0 %v173
    %v296 = vpop.f32.mrf.mxu0
    %v297 = vadd.f32 2e-08, %v296
    %298 = vdwg.mxu0
    %v299 = vrcp.pop %v297
    %v300 = vmul.f32 %v297, %v299
    %v301 = vsub.f32 1.0, %v300
    %v302 = vmul.f32 %v299, %v301
    %v303 = vadd.f32 %v299, %v302
    %vm304 = vweird.f32 %v297
    %vm305 = vweird.f32 %v299
    %vm306 = vmor %vm304, %vm305
    %v307 = vsel %vm306, %v299, %v303
    %v308 = vand.u32 2147483647, %v297
    %vm309 = vcmp.eq.f32.partialorder %v308, 8.507059e+37
    %v310 = vand.u32 %v297, 2147483648
    %v311 = vor.u32 1.1754944e-38, %v310
    %v312 = vsel %vm309, %v311, %v307
    %v313 = vmul.f32 %v217, %v312
    %v314 = vmul.f32 %v15, %v313
    %315 = vxpose.xlu0.b32.start [1/16] %v314, 128
    %316 = vxpose.xlu0.b32.cont [2/16] 0.0, 128
    %317 = vxpose.xlu0.b32.cont [3/16] 0.0, 128
    %318 = vxpose.xlu0.b32.cont [4/16] 0.0, 128
    %319 = vxpose.xlu0.b32.cont [5/16] 0.0, 128
    %320 = vxpose.xlu0.b32.cont [6/16] 0.0, 128
    %321 = vxpose.xlu0.b32.cont [7/16] 0.0, 128
    %322 = vxpose.xlu0.b32.cont [8/16] 0.0, 128
    %323 = vxpose.xlu0.b32.cont [9/16] 0.0, 128
    %324 = vxpose.xlu0.b32.cont [10/16] 0.0, 128
    %325 = vxpose.xlu0.b32.cont [11/16] 0.0, 128
    %326 = vxpose.xlu0.b32.cont [12/16] 0.0, 128
    %327 = vxpose.xlu0.b32.cont [13/16] 0.0, 128
    %328 = vxpose.xlu0.b32.cont [14/16] 0.0, 128
    %329 = vxpose.xlu0.b32.cont [15/16] 0.0, 128
    %330 = vxpose.xlu0.b32.end [16/16] 0.0, 128
    %v331 = vpop.trf.xlu0
    %v332 = vpop.trf.xlu0
    %v333 = vpop.trf.xlu0
    %v334 = vpop.trf.xlu0
    %v335 = vpop.trf.xlu0
    %v336 = vpop.trf.xlu0
    %v337 = vpop.trf.xlu0
    %v338 = vpop.trf.xlu0
    %v339 = vpop.trf.xlu0
    %v340 = vpop.trf.xlu0
    %v341 = vpop.trf.xlu0
    %v342 = vpop.trf.xlu0
    %v343 = vpop.trf.xlu0
    %v344 = vpop.trf.xlu0
    %v345 = vpop.trf.xlu0
    %v346 = vpop.trf.xlu0
    %v348 = vsel %vm81, %v331, 0
    %v351 = vsel %vm81, %v332, 0
    %v354 = vsel %vm81, %v333, 0
    %v357 = vsel %vm81, %v334, 0
    %v360 = vsel %vm81, %v335, 0
    %v363 = vsel %vm81, %v336, 0
    %v366 = vsel %vm81, %v337, 0
    %v369 = vsel %vm81, %v338, 0
    %371 = vmatpush.msra.mxu0 0.0
    %372 = vmatpush.msra.mxu0 0.0
    %373 = vmatpush.msra.mxu0 0.0
    %374 = vmatpush.msra.mxu0 0.0
    %375 = vmatpush.msra.mxu0 0.0
    %376 = vmatpush.msra.mxu0 0.0
    %377 = vmatpush.msra.mxu0 0.0
    %378 = vmatpush.msra.mxu0 0.0
    %379 = vmatpush.msra.mxu0 0.0
    %380 = vmatpush.msra.mxu0 0.0
    %381 = vmatpush.msra.mxu0 0.0
    %382 = vmatpush.msra.mxu0 0.0
    %383 = vmatpush.msra.mxu0 0.0
    %384 = vmatpush.msra.mxu0 0.0
    %385 = vmatpush.msra.mxu0 0.0
    %386 = vmatpush.msra.mxu0 %v254
    %387 = vmatmul.f32.gmra.mxu0 %v348
    %v388 = vpop.f32.mrf.mxu0
    %v389 = vadd.f32 0.0, %v388
    %390 = vmatmul.f32.gmra.mxu0 %v351
    %v391 = vpop.f32.mrf.mxu0
    %v392 = vadd.f32 0.0, %v391
    %393 = vmatmul.f32.gmra.mxu0 %v354
    %v394 = vpop.f32.mrf.mxu0
    %v395 = vadd.f32 0.0, %v394
    %396 = vmatmul.f32.gmra.mxu0 %v357
    %v397 = vpop.f32.mrf.mxu0
    %v398 = vadd.f32 0.0, %v397
    %399 = vmatmul.f32.gmra.mxu0 %v360
    %v400 = vpop.f32.mrf.mxu0
    %v401 = vadd.f32 0.0, %v400
    %402 = vmatmul.f32.gmra.mxu0 %v363
    %v403 = vpop.f32.mrf.mxu0
    %v404 = vadd.f32 0.0, %v403
    %405 = vmatmul.f32.gmra.mxu0 %v366
    %v406 = vpop.f32.mrf.mxu0
    %v407 = vadd.f32 0.0, %v406
    %408 = vmatmul.f32.gmra.mxu0 %v369
    %v409 = vpop.f32.mrf.mxu0
    %v410 = vadd.f32 0.0, %v409
    %411 = vdwg.mxu0
    %v413 = vsel %vm147, %v314, 0
    %415 = vmatpush.msra.mxu0 0.0
    %416 = vmatpush.msra.mxu0 0.0
    %417 = vmatpush.msra.mxu0 0.0
    %418 = vmatpush.msra.mxu0 0.0
    %419 = vmatpush.msra.mxu0 0.0
    %420 = vmatpush.msra.mxu0 0.0
    %421 = vmatpush.msra.mxu0 0.0
    %422 = vmatpush.msra.mxu0 0.0
    %423 = vmatpush.msra.mxu0 %v40
    %424 = vmatpush.msra.mxu0 %v39
    %425 = vmatpush.msra.mxu0 %v38
    %426 = vmatpush.msra.mxu0 %v37
    %427 = vmatpush.msra.mxu0 %v36
    %428 = vmatpush.msra.mxu0 %v35
    %429 = vmatpush.msra.mxu0 %v34
    %430 = vmatpush.msra.mxu0 %v33
    %431 = vmatmul.f32.gmra.mxu0 %v413
    %v432 = vpop.f32.mrf.mxu0
    %v433 = vadd.f32 0.0, %v432
    %434 = vdwg.mxu0
    %v436 = vsel %vm171, %v254, 0
    %438 = vmatpush.xpose.msra.mxu0 0.0
    %439 = vmatpush.xpose.msra.mxu0 0.0
    %440 = vmatpush.xpose.msra.mxu0 0.0
    %441 = vmatpush.xpose.msra.mxu0 0.0
    %442 = vmatpush.xpose.msra.mxu0 0.0
    %443 = vmatpush.xpose.msra.mxu0 0.0
    %444 = vmatpush.xpose.msra.mxu0 0.0
    %445 = vmatpush.xpose.msra.mxu0 0.0
    %446 = vmatpush.xpose.msra.mxu0 %v197
    %447 = vmatpush.xpose.msra.mxu0 %v194
    %448 = vmatpush.xpose.msra.mxu0 %v191
    %449 = vmatpush.xpose.msra.mxu0 %v188
    %450 = vmatpush.xpose.msra.mxu0 %v185
    %451 = vmatpush.xpose.msra.mxu0 %v182
    %452 = vmatpush.xpose.msra.mxu0 %v179
    %453 = vmatpush.xpose.msra.mxu0 %v176
    %454 = vmatmul.f32.gmra.mxu0 %v436
    %v455 = vpop.f32.mrf.mxu0
    %v456 = vadd.f32 0.0, %v455
    %457 = vdwg.mxu0
    %458 = vmatpush.msra.mxu0 0.0
    %459 = vmatpush.msra.mxu0 0.0
    %460 = vmatpush.msra.mxu0 0.0
    %461 = vmatpush.msra.mxu0 0.0
    %462 = vmatpush.msra.mxu0 0.0
    %463 = vmatpush.msra.mxu0 0.0
    %464 = vmatpush.msra.mxu0 0.0
    %465 = vmatpush.msra.mxu0 0.0
    %466 = vmatpush.msra.mxu0 %v410
    %467 = vmatpush.msra.mxu0 %v407
    %468 = vmatpush.msra.mxu0 %v404
    %469 = vmatpush.msra.mxu0 %v401
    %470 = vmatpush.msra.mxu0 %v398
    %471 = vmatpush.msra.mxu0 %v395
    %472 = vmatpush.msra.mxu0 %v392
    %473 = vmatpush.msra.mxu0 %v389
    %474 = vmatmul.f32.gmra.mxu0 %v413
    %v475 = vpop.f32.mrf.mxu0
    %v476 = vadd.f32 2e-08, %v475
    %477 = vdwg.mxu0
    %v478 = vrcp.pop %v476
    %v479 = vmul.f32 %v476, %v478
    %v480 = vsub.f32 1.0, %v479
    %v481 = vmul.f32 %v478, %v480
    %v482 = vadd.f32 %v478, %v481
    %vm483 = vweird.f32 %v476
    %vm484 = vweird.f32 %v478
    %vm485 = vmor %vm483, %vm484
    %v486 = vsel %vm485, %v478, %v482
    %v487 = vand.u32 2147483647, %v476
    %vm488 = vcmp.eq.f32.partialorder %v487, 8.507059e+37
    %v489 = vand.u32 %v476, 2147483648
    %v490 = vor.u32 1.1754944e-38, %v489
    %v491 = vsel %vm488, %v490, %v486
    %v492 = vmul.f32 %v433, %v491
    %v493 = vmul.f32 %v254, %v492
    %v495 = vsel %vm171, %v389, 0
    %v498 = vsel %vm171, %v392, 0
    %v501 = vsel %vm171, %v395, 0
    %v504 = vsel %vm171, %v398, 0
    %v507 = vsel %vm171, %v401, 0
    %v510 = vsel %vm171, %v404, 0
    %v513 = vsel %vm171, %v407, 0
    %v516 = vsel %vm171, %v410, 0
    %518 = vmatpush.xpose.msra.mxu0 0.0
    %519 = vmatpush.xpose.msra.mxu0 0.0
    %520 = vmatpush.xpose.msra.mxu0 0.0
    %521 = vmatpush.xpose.msra.mxu0 0.0
    %522 = vmatpush.xpose.msra.mxu0 0.0
    %523 = vmatpush.xpose.msra.mxu0 0.0
    %524 = vmatpush.xpose.msra.mxu0 0.0
    %525 = vmatpush.xpose.msra.mxu0 0.0
    %526 = vmatpush.xpose.msra.mxu0 %v516
    %527 = vmatpush.xpose.msra.mxu0 %v513
    %528 = vmatpush.xpose.msra.mxu0 %v510
    %529 = vmatpush.xpose.msra.mxu0 %v507
    %530 = vmatpush.xpose.msra.mxu0 %v504
    %531 = vmatpush.xpose.msra.mxu0 %v501
    %532 = vmatpush.xpose.msra.mxu0 %v498
    %533 = vmatpush.xpose.msra.mxu0 %v495
    %534 = vmatmul.f32.gmra.mxu0 %v436
    %v535 = vpop.f32.mrf.mxu0
    %v536 = vadd.f32 2e-08, %v535
    %537 = vdwg.mxu0
    %v538 = vrcp.pop %v536
    %v539 = vmul.f32 %v536, %v538
    %v540 = vsub.f32 1.0, %v539
    %v541 = vmul.f32 %v538, %v540
    %v542 = vadd.f32 %v538, %v541
    %vm543 = vweird.f32 %v536
    %vm544 = vweird.f32 %v538
    %vm545 = vmor %vm543, %vm544
    %v546 = vsel %vm545, %v538, %v542
    %v547 = vand.u32 2147483647, %v536
    %vm548 = vcmp.eq.f32.partialorder %v547, 8.507059e+37
    %v549 = vand.u32 %v536, 2147483648
    %v550 = vor.u32 1.1754944e-38, %v549
    %v551 = vsel %vm548, %v550, %v546
    %v552 = vmul.f32 %v456, %v551
    %v553 = vmul.f32 %v314, %v552
    %554 = vxpose.xlu0.b32.start [1/16] %v553, 128
    %555 = vxpose.xlu0.b32.cont [2/16] 0.0, 128
    %556 = vxpose.xlu0.b32.cont [3/16] 0.0, 128
    %557 = vxpose.xlu0.b32.cont [4/16] 0.0, 128
    %558 = vxpose.xlu0.b32.cont [5/16] 0.0, 128
    %559 = vxpose.xlu0.b32.cont [6/16] 0.0, 128
    %560 = vxpose.xlu0.b32.cont [7/16] 0.0, 128
    %561 = vxpose.xlu0.b32.cont [8/16] 0.0, 128
    %562 = vxpose.xlu0.b32.cont [9/16] 0.0, 128
    %563 = vxpose.xlu0.b32.cont [10/16] 0.0, 128
    %564 = vxpose.xlu0.b32.cont [11/16] 0.0, 128
    %565 = vxpose.xlu0.b32.cont [12/16] 0.0, 128
    %566 = vxpose.xlu0.b32.cont [13/16] 0.0, 128
    %567 = vxpose.xlu0.b32.cont [14/16] 0.0, 128
    %568 = vxpose.xlu0.b32.cont [15/16] 0.0, 128
    %569 = vxpose.xlu0.b32.end [16/16] 0.0, 128
    %v570 = vpop.trf.xlu0
    %v571 = vpop.trf.xlu0
    %v572 = vpop.trf.xlu0
    %v573 = vpop.trf.xlu0
    %v574 = vpop.trf.xlu0
    %v575 = vpop.trf.xlu0
    %v576 = vpop.trf.xlu0
    %v577 = vpop.trf.xlu0
    %v578 = vpop.trf.xlu0
    %v579 = vpop.trf.xlu0
    %v580 = vpop.trf.xlu0
    %v581 = vpop.trf.xlu0
    %v582 = vpop.trf.xlu0
    %v583 = vpop.trf.xlu0
    %v584 = vpop.trf.xlu0
    %v585 = vpop.trf.xlu0
    %v587 = vsel %vm81, %v570, 0
    %v590 = vsel %vm81, %v571, 0
    %v593 = vsel %vm81, %v572, 0
    %v596 = vsel %vm81, %v573, 0
    %v599 = vsel %vm81, %v574, 0
    %v602 = vsel %vm81, %v575, 0
    %v605 = vsel %vm81, %v576, 0
    %v608 = vsel %vm81, %v577, 0
    %610 = vmatpush.msra.mxu0 0.0
    %611 = vmatpush.msra.mxu0 0.0
    %612 = vmatpush.msra.mxu0 0.0
    %613 = vmatpush.msra.mxu0 0.0
    %614 = vmatpush.msra.mxu0 0.0
    %615 = vmatpush.msra.mxu0 0.0
    %616 = vmatpush.msra.mxu0 0.0
    %617 = vmatpush.msra.mxu0 0.0
    %618 = vmatpush.msra.mxu0 0.0
    %619 = vmatpush.msra.mxu0 0.0
    %620 = vmatpush.msra.mxu0 0.0
    %621 = vmatpush.msra.mxu0 0.0
    %622 = vmatpush.msra.mxu0 0.0
    %623 = vmatpush.msra.mxu0 0.0
    %624 = vmatpush.msra.mxu0 0.0
    %625 = vmatpush.msra.mxu0 %v493
    %626 = vmatmul.f32.gmra.mxu0 %v587
    %v627 = vpop.f32.mrf.mxu0
    %v628 = vadd.f32 0.0, %v627
    %629 = vmatmul.f32.gmra.mxu0 %v590
    %v630 = vpop.f32.mrf.mxu0
    %v631 = vadd.f32 0.0, %v630
    %632 = vmatmul.f32.gmra.mxu0 %v593
    %v633 = vpop.f32.mrf.mxu0
    %v634 = vadd.f32 0.0, %v633
    %635 = vmatmul.f32.gmra.mxu0 %v596
    %v636 = vpop.f32.mrf.mxu0
    %v637 = vadd.f32 0.0, %v636
    %638 = vmatmul.f32.gmra.mxu0 %v599
    %v639 = vpop.f32.mrf.mxu0
    %v640 = vadd.f32 0.0, %v639
    %641 = vmatmul.f32.gmra.mxu0 %v602
    %v642 = vpop.f32.mrf.mxu0
    %v643 = vadd.f32 0.0, %v642
    %644 = vmatmul.f32.gmra.mxu0 %v605
    %v645 = vpop.f32.mrf.mxu0
    %v646 = vadd.f32 0.0, %v645
    %647 = vmatmul.f32.gmra.mxu0 %v608
    %v648 = vpop.f32.mrf.mxu0
    %v649 = vadd.f32 0.0, %v648
    %650 = vdwg.mxu0
    %v652 = vsel %vm147, %v553, 0
    %654 = vmatpush.msra.mxu0 0.0
    %655 = vmatpush.msra.mxu0 0.0
    %656 = vmatpush.msra.mxu0 0.0
    %657 = vmatpush.msra.mxu0 0.0
    %658 = vmatpush.msra.mxu0 0.0
    %659 = vmatpush.msra.mxu0 0.0
    %660 = vmatpush.msra.mxu0 0.0
    %661 = vmatpush.msra.mxu0 0.0
    %662 = vmatpush.msra.mxu0 %v40
    %663 = vmatpush.msra.mxu0 %v39
    %664 = vmatpush.msra.mxu0 %v38
    %665 = vmatpush.msra.mxu0 %v37
    %666 = vmatpush.msra.mxu0 %v36
    %667 = vmatpush.msra.mxu0 %v35
    %668 = vmatpush.msra.mxu0 %v34
    %669 = vmatpush.msra.mxu0 %v33
    %670 = vmatmul.f32.gmra.mxu0 %v652
    %v671 = vpop.f32.mrf.mxu0
    %v672 = vadd.f32 0.0, %v671
    %673 = vdwg.mxu0
    %v675 = vsel %vm171, %v493, 0
    %677 = vmatpush.xpose.msra.mxu0 0.0
    %678 = vmatpush.xpose.msra.mxu0 0.0
    %679 = vmatpush.xpose.msra.mxu0 0.0
    %680 = vmatpush.xpose.msra.mxu0 0.0
    %681 = vmatpush.xpose.msra.mxu0 0.0
    %682 = vmatpush.xpose.msra.mxu0 0.0
    %683 = vmatpush.xpose.msra.mxu0 0.0
    %684 = vmatpush.xpose.msra.mxu0 0.0
    %685 = vmatpush.xpose.msra.mxu0 %v197
    %686 = vmatpush.xpose.msra.mxu0 %v194
    %687 = vmatpush.xpose.msra.mxu0 %v191
    %688 = vmatpush.xpose.msra.mxu0 %v188
    %689 = vmatpush.xpose.msra.mxu0 %v185
    %690 = vmatpush.xpose.msra.mxu0 %v182
    %691 = vmatpush.xpose.msra.mxu0 %v179
    %692 = vmatpush.xpose.msra.mxu0 %v176
    %693 = vmatmul.f32.gmra.mxu0 %v675
    %v694 = vpop.f32.mrf.mxu0
    %v695 = vadd.f32 0.0, %v694
    %696 = vdwg.mxu0
    %697 = vmatpush.msra.mxu0 0.0
    %698 = vmatpush.msra.mxu0 0.0
    %699 = vmatpush.msra.mxu0 0.0
    %700 = vmatpush.msra.mxu0 0.0
    %701 = vmatpush.msra.mxu0 0.0
    %702 = vmatpush.msra.mxu0 0.0
    %703 = vmatpush.msra.mxu0 0.0
    %704 = vmatpush.msra.mxu0 0.0
    %705 = vmatpush.msra.mxu0 %v649
    %706 = vmatpush.msra.mxu0 %v646
    %707 = vmatpush.msra.mxu0 %v643
    %708 = vmatpush.msra.mxu0 %v640
    %709 = vmatpush.msra.mxu0 %v637
    %710 = vmatpush.msra.mxu0 %v634
    %711 = vmatpush.msra.mxu0 %v631
    %712 = vmatpush.msra.mxu0 %v628
    %713 = vmatmul.f32.gmra.mxu0 %v652
    %v714 = vpop.f32.mrf.mxu0
    %v715 = vadd.f32 2e-08, %v714
    %716 = vdwg.mxu0
    %v717 = vrcp.pop %v715
    %v718 = vmul.f32 %v715, %v717
    %v719 = vsub.f32 1.0, %v718
    %v720 = vmul.f32 %v717, %v719
    %v721 = vadd.f32 %v717, %v720
    %vm722 = vweird.f32 %v715
    %vm723 = vweird.f32 %v717
    %vm724 = vmor %vm722, %vm723
    %v725 = vsel %vm724, %v717, %v721
    %v726 = vand.u32 2147483647, %v715
    %vm727 = vcmp.eq.f32.partialorder %v726, 8.507059e+37
    %v728 = vand.u32 %v715, 2147483648
    %v729 = vor.u32 1.1754944e-38, %v728
    %v730 = vsel %vm727, %v729, %v725
    %v731 = vmul.f32 %v672, %v730
    %v732 = vmul.f32 %v493, %v731
    %v734 = vsel %vm171, %v628, 0
    %v737 = vsel %vm171, %v631, 0
    %v740 = vsel %vm171, %v634, 0
    %v743 = vsel %vm171, %v637, 0
    %v746 = vsel %vm171, %v640, 0
    %v749 = vsel %vm171, %v643, 0
    %v752 = vsel %vm171, %v646, 0
    %v755 = vsel %vm171, %v649, 0
    %757 = vmatpush.xpose.msra.mxu0 0.0
    %758 = vmatpush.xpose.msra.mxu0 0.0
    %759 = vmatpush.xpose.msra.mxu0 0.0
    %760 = vmatpush.xpose.msra.mxu0 0.0
    %761 = vmatpush.xpose.msra.mxu0 0.0
    %762 = vmatpush.xpose.msra.mxu0 0.0
    %763 = vmatpush.xpose.msra.mxu0 0.0
    %764 = vmatpush.xpose.msra.mxu0 0.0
    %765 = vmatpush.xpose.msra.mxu0 %v755
    %766 = vmatpush.xpose.msra.mxu0 %v752
    %767 = vmatpush.xpose.msra.mxu0 %v749
    %768 = vmatpush.xpose.msra.mxu0 %v746
    %769 = vmatpush.xpose.msra.mxu0 %v743
    %770 = vmatpush.xpose.msra.mxu0 %v740
    %771 = vmatpush.xpose.msra.mxu0 %v737
    %772 = vmatpush.xpose.msra.mxu0 %v734
    %773 = vmatmul.f32.gmra.mxu0 %v675
    %v774 = vpop.f32.mrf.mxu0
    %v775 = vadd.f32 2e-08, %v774
    %776 = vdwg.mxu0
    %v777 = vrcp.pop %v775
    %v778 = vmul.f32 %v775, %v777
    %v779 = vsub.f32 1.0, %v778
    %v780 = vmul.f32 %v777, %v779
    %v781 = vadd.f32 %v777, %v780
    %vm782 = vweird.f32 %v775
    %vm783 = vweird.f32 %v777
    %vm784 = vmor %vm782, %vm783
    %v785 = vsel %vm784, %v777, %v781
    %v786 = vand.u32 2147483647, %v775
    %vm787 = vcmp.eq.f32.partialorder %v786, 8.507059e+37
    %v788 = vand.u32 %v775, 2147483648
    %v789 = vor.u32 1.1754944e-38, %v788
    %v790 = vsel %vm787, %v789, %v785
    %v791 = vmul.f32 %v695, %v790
    %v792 = vmul.f32 %v553, %v791
    %793 = vxpose.xlu0.b32.start [1/16] %v792, 128
    %794 = vxpose.xlu0.b32.cont [2/16] 0.0, 128
    %795 = vxpose.xlu0.b32.cont [3/16] 0.0, 128
    %796 = vxpose.xlu0.b32.cont [4/16] 0.0, 128
    %797 = vxpose.xlu0.b32.cont [5/16] 0.0, 128
    %798 = vxpose.xlu0.b32.cont [6/16] 0.0, 128
    %799 = vxpose.xlu0.b32.cont [7/16] 0.0, 128
    %800 = vxpose.xlu0.b32.cont [8/16] 0.0, 128
    %801 = vxpose.xlu0.b32.cont [9/16] 0.0, 128
    %802 = vxpose.xlu0.b32.cont [10/16] 0.0, 128
    %803 = vxpose.xlu0.b32.cont [11/16] 0.0, 128
    %804 = vxpose.xlu0.b32.cont [12/16] 0.0, 128
    %805 = vxpose.xlu0.b32.cont [13/16] 0.0, 128
    %806 = vxpose.xlu0.b32.cont [14/16] 0.0, 128
    %807 = vxpose.xlu0.b32.cont [15/16] 0.0, 128
    %808 = vxpose.xlu0.b32.end [16/16] 0.0, 128
    %v809 = vpop.trf.xlu0
    %v810 = vpop.trf.xlu0
    %v811 = vpop.trf.xlu0
    %v812 = vpop.trf.xlu0
    %v813 = vpop.trf.xlu0
    %v814 = vpop.trf.xlu0
    %v815 = vpop.trf.xlu0
    %v816 = vpop.trf.xlu0
    %v817 = vpop.trf.xlu0
    %v818 = vpop.trf.xlu0
    %v819 = vpop.trf.xlu0
    %v820 = vpop.trf.xlu0
    %v821 = vpop.trf.xlu0
    %v822 = vpop.trf.xlu0
    %v823 = vpop.trf.xlu0
    %v824 = vpop.trf.xlu0
    %v826 = vsel %vm81, %v809, 0
    %v829 = vsel %vm81, %v810, 0
    %v832 = vsel %vm81, %v811, 0
    %v835 = vsel %vm81, %v812, 0
    %v838 = vsel %vm81, %v813, 0
    %v841 = vsel %vm81, %v814, 0
    %v844 = vsel %vm81, %v815, 0
    %v847 = vsel %vm81, %v816, 0
    %849 = vmatpush.msra.mxu0 0.0
    %850 = vmatpush.msra.mxu0 0.0
    %851 = vmatpush.msra.mxu0 0.0
    %852 = vmatpush.msra.mxu0 0.0
    %853 = vmatpush.msra.mxu0 0.0
    %854 = vmatpush.msra.mxu0 0.0
    %855 = vmatpush.msra.mxu0 0.0
    %856 = vmatpush.msra.mxu0 0.0
    %857 = vmatpush.msra.mxu0 0.0
    %858 = vmatpush.msra.mxu0 0.0
    %859 = vmatpush.msra.mxu0 0.0
    %860 = vmatpush.msra.mxu0 0.0
    %861 = vmatpush.msra.mxu0 0.0
    %862 = vmatpush.msra.mxu0 0.0
    %863 = vmatpush.msra.mxu0 0.0
    %864 = vmatpush.msra.mxu0 %v732
    %865 = vmatmul.f32.gmra.mxu0 %v826
    %v866 = vpop.f32.mrf.mxu0
    %v867 = vadd.f32 0.0, %v866
    %868 = vmatmul.f32.gmra.mxu0 %v829
    %v869 = vpop.f32.mrf.mxu0
    %v870 = vadd.f32 0.0, %v869
    %871 = vmatmul.f32.gmra.mxu0 %v832
    %v872 = vpop.f32.mrf.mxu0
    %v873 = vadd.f32 0.0, %v872
    %874 = vmatmul.f32.gmra.mxu0 %v835
    %v875 = vpop.f32.mrf.mxu0
    %v876 = vadd.f32 0.0, %v875
    %877 = vmatmul.f32.gmra.mxu0 %v838
    %v878 = vpop.f32.mrf.mxu0
    %v879 = vadd.f32 0.0, %v878
    %880 = vmatmul.f32.gmra.mxu0 %v841
    %v881 = vpop.f32.mrf.mxu0
    %v882 = vadd.f32 0.0, %v881
    %883 = vmatmul.f32.gmra.mxu0 %v844
    %v884 = vpop.f32.mrf.mxu0
    %v885 = vadd.f32 0.0, %v884
    %886 = vmatmul.f32.gmra.mxu0 %v847
    %v887 = vpop.f32.mrf.mxu0
    %v888 = vadd.f32 0.0, %v887
    %889 = vdwg.mxu0
    %v891 = vsel %vm147, %v792, 0
    %893 = vmatpush.msra.mxu0 0.0
    %894 = vmatpush.msra.mxu0 0.0
    %895 = vmatpush.msra.mxu0 0.0
    %896 = vmatpush.msra.mxu0 0.0
    %897 = vmatpush.msra.mxu0 0.0
    %898 = vmatpush.msra.mxu0 0.0
    %899 = vmatpush.msra.mxu0 0.0
    %900 = vmatpush.msra.mxu0 0.0
    %901 = vmatpush.msra.mxu0 %v40
    %902 = vmatpush.msra.mxu0 %v39
    %903 = vmatpush.msra.mxu0 %v38
    %904 = vmatpush.msra.mxu0 %v37
    %905 = vmatpush.msra.mxu0 %v36
    %906 = vmatpush.msra.mxu0 %v35
    %907 = vmatpush.msra.mxu0 %v34
    %908 = vmatpush.msra.mxu0 %v33
    %909 = vmatmul.f32.gmra.mxu0 %v891
    %v910 = vpop.f32.mrf.mxu0
    %v911 = vadd.f32 0.0, %v910
    %912 = vdwg.mxu0
    %v914 = vsel %vm171, %v732, 0
    %916 = vmatpush.xpose.msra.mxu0 0.0
    %917 = vmatpush.xpose.msra.mxu0 0.0
    %918 = vmatpush.xpose.msra.mxu0 0.0
    %919 = vmatpush.xpose.msra.mxu0 0.0
    %920 = vmatpush.xpose.msra.mxu0 0.0
    %921 = vmatpush.xpose.msra.mxu0 0.0
    %922 = vmatpush.xpose.msra.mxu0 0.0
    %923 = vmatpush.xpose.msra.mxu0 0.0
    %924 = vmatpush.xpose.msra.mxu0 %v197
    %925 = vmatpush.xpose.msra.mxu0 %v194
    %926 = vmatpush.xpose.msra.mxu0 %v191
    %927 = vmatpush.xpose.msra.mxu0 %v188
    %928 = vmatpush.xpose.msra.mxu0 %v185
    %929 = vmatpush.xpose.msra.mxu0 %v182
    %930 = vmatpush.xpose.msra.mxu0 %v179
    %931 = vmatpush.xpose.msra.mxu0 %v176
    %932 = vmatmul.f32.gmra.mxu0 %v914
    %v933 = vpop.f32.mrf.mxu0
    %v934 = vadd.f32 0.0, %v933
    %935 = vdwg.mxu0
    %936 = vmatpush.msra.mxu0 0.0
    %937 = vmatpush.msra.mxu0 0.0
    %938 = vmatpush.msra.mxu0 0.0
    %939 = vmatpush.msra.mxu0 0.0
    %940 = vmatpush.msra.mxu0 0.0
    %941 = vmatpush.msra.mxu0 0.0
    %942 = vmatpush.msra.mxu0 0.0
    %943 = vmatpush.msra.mxu0 0.0
    %944 = vmatpush.msra.mxu0 %v888
    %945 = vmatpush.msra.mxu0 %v885
    %946 = vmatpush.msra.mxu0 %v882
    %947 = vmatpush.msra.mxu0 %v879
    %948 = vmatpush.msra.mxu0 %v876
    %949 = vmatpush.msra.mxu0 %v873
    %950 = vmatpush.msra.mxu0 %v870
    %951 = vmatpush.msra.mxu0 %v867
    %952 = vmatmul.f32.gmra.mxu0 %v891
    %v953 = vpop.f32.mrf.mxu0
    %v954 = vadd.f32 2e-08, %v953
    %955 = vdwg.mxu0
    %v956 = vrcp.pop %v954
    %v957 = vmul.f32 %v954, %v956
    %v958 = vsub.f32 1.0, %v957
    %v959 = vmul.f32 %v956, %v958
    %v960 = vadd.f32 %v956, %v959
    %vm961 = vweird.f32 %v954
    %vm962 = vweird.f32 %v956
    %vm963 = vmor %vm961, %vm962
    %v964 = vsel %vm963, %v956, %v960
    %v965 = vand.u32 2147483647, %v954
    %vm966 = vcmp.eq.f32.partialorder %v965, 8.507059e+37
    %v967 = vand.u32 %v954, 2147483648
    %v968 = vor.u32 1.1754944e-38, %v967
    %v969 = vsel %vm966, %v968, %v964
    %v970 = vmul.f32 %v911, %v969
    %v971 = vmul.f32 %v732, %v970
    %v973 = vsel %vm171, %v867, 0
    %v976 = vsel %vm171, %v870, 0
    %v979 = vsel %vm171, %v873, 0
    %v982 = vsel %vm171, %v876, 0
    %v985 = vsel %vm171, %v879, 0
    %v988 = vsel %vm171, %v882, 0
    %v991 = vsel %vm171, %v885, 0
    %v994 = vsel %vm171, %v888, 0
    %996 = vmatpush.xpose.msra.mxu0 0.0
    %997 = vmatpush.xpose.msra.mxu0 0.0
    %998 = vmatpush.xpose.msra.mxu0 0.0
    %999 = vmatpush.xpose.msra.mxu0 0.0
    %1000 = vmatpush.xpose.msra.mxu0 0.0
    %1001 = vmatpush.xpose.msra.mxu0 0.0
    %1002 = vmatpush.xpose.msra.mxu0 0.0
    %1003 = vmatpush.xpose.msra.mxu0 0.0
    %1004 = vmatpush.xpose.msra.mxu0 %v994
    %1005 = vmatpush.xpose.msra.mxu0 %v991
    %1006 = vmatpush.xpose.msra.mxu0 %v988
    %1007 = vmatpush.xpose.msra.mxu0 %v985
    %1008 = vmatpush.xpose.msra.mxu0 %v982
    %1009 = vmatpush.xpose.msra.mxu0 %v979
    %1010 = vmatpush.xpose.msra.mxu0 %v976
    %1011 = vmatpush.xpose.msra.mxu0 %v973
    %1012 = vmatmul.f32.gmra.mxu0 %v914
    %v1013 = vpop.f32.mrf.mxu0
    %v1014 = vadd.f32 2e-08, %v1013
    %1015 = vdwg.mxu0
    %v1016 = vrcp.pop %v1014
    %v1017 = vmul.f32 %v1014, %v1016
    %v1018 = vsub.f32 1.0, %v1017
    %v1019 = vmul.f32 %v1016, %v1018
    %v1020 = vadd.f32 %v1016, %v1019
    %vm1021 = vweird.f32 %v1014
    %vm1022 = vweird.f32 %v1016
    %vm1023 = vmor %vm1021, %vm1022
    %v1024 = vsel %vm1023, %v1016, %v1020
    %v1025 = vand.u32 2147483647, %v1014
    %vm1026 = vcmp.eq.f32.partialorder %v1025, 8.507059e+37
    %v1027 = vand.u32 %v1014, 2147483648
    %v1028 = vor.u32 1.1754944e-38, %v1027
    %v1029 = vsel %vm1026, %v1028, %v1024
    %v1030 = vmul.f32 %v934, %v1029
    %v1031 = vmul.f32 %v792, %v1030
    %1032 = vxpose.xlu0.b32.start [1/16] %v1031, 128
    %1033 = vxpose.xlu0.b32.cont [2/16] 0.0, 128
    %1034 = vxpose.xlu0.b32.cont [3/16] 0.0, 128
    %1035 = vxpose.xlu0.b32.cont [4/16] 0.0, 128
    %1036 = vxpose.xlu0.b32.cont [5/16] 0.0, 128
    %1037 = vxpose.xlu0.b32.cont [6/16] 0.0, 128
    %1038 = vxpose.xlu0.b32.cont [7/16] 0.0, 128
    %1039 = vxpose.xlu0.b32.cont [8/16] 0.0, 128
    %1040 = vxpose.xlu0.b32.cont [9/16] 0.0, 128
    %1041 = vxpose.xlu0.b32.cont [10/16] 0.0, 128
    %1042 = vxpose.xlu0.b32.cont [11/16] 0.0, 128
    %1043 = vxpose.xlu0.b32.cont [12/16] 0.0, 128
    %1044 = vxpose.xlu0.b32.cont [13/16] 0.0, 128
    %1045 = vxpose.xlu0.b32.cont [14/16] 0.0, 128
    %1046 = vxpose.xlu0.b32.cont [15/16] 0.0, 128
    %1047 = vxpose.xlu0.b32.end [16/16] 0.0, 128
    %v1048 = vpop.trf.xlu0
    %v1049 = vpop.trf.xlu0
    %v1050 = vpop.trf.xlu0
    %v1051 = vpop.trf.xlu0
    %v1052 = vpop.trf.xlu0
    %v1053 = vpop.trf.xlu0
    %v1054 = vpop.trf.xlu0
    %v1055 = vpop.trf.xlu0
    %v1056 = vpop.trf.xlu0
    %v1057 = vpop.trf.xlu0
    %v1058 = vpop.trf.xlu0
    %v1059 = vpop.trf.xlu0
    %v1060 = vpop.trf.xlu0
    %v1061 = vpop.trf.xlu0
    %v1062 = vpop.trf.xlu0
    %v1063 = vpop.trf.xlu0
    %v1065 = vsel %vm81, %v1048, 0
    %v1068 = vsel %vm81, %v1049, 0
    %v1071 = vsel %vm81, %v1050, 0
    %v1074 = vsel %vm81, %v1051, 0
    %v1077 = vsel %vm81, %v1052, 0
    %v1080 = vsel %vm81, %v1053, 0
    %v1083 = vsel %vm81, %v1054, 0
    %v1086 = vsel %vm81, %v1055, 0
    %1088 = vmatpush.msra.mxu0 0.0
    %1089 = vmatpush.msra.mxu0 0.0
    %1090 = vmatpush.msra.mxu0 0.0
    %1091 = vmatpush.msra.mxu0 0.0
    %1092 = vmatpush.msra.mxu0 0.0
    %1093 = vmatpush.msra.mxu0 0.0
    %1094 = vmatpush.msra.mxu0 0.0
    %1095 = vmatpush.msra.mxu0 0.0
    %1096 = vmatpush.msra.mxu0 0.0
    %1097 = vmatpush.msra.mxu0 0.0
    %1098 = vmatpush.msra.mxu0 0.0
    %1099 = vmatpush.msra.mxu0 0.0
    %1100 = vmatpush.msra.mxu0 0.0
    %1101 = vmatpush.msra.mxu0 0.0
    %1102 = vmatpush.msra.mxu0 0.0
    %1103 = vmatpush.msra.mxu0 %v971
    %1104 = vmatmul.f32.gmra.mxu0 %v1065
    %v1105 = vpop.f32.mrf.mxu0
    %v1106 = vadd.f32 0.0, %v1105
    %1107 = vmatmul.f32.gmra.mxu0 %v1068
    %v1108 = vpop.f32.mrf.mxu0
    %v1109 = vadd.f32 0.0, %v1108
    %1110 = vmatmul.f32.gmra.mxu0 %v1071
    %v1111 = vpop.f32.mrf.mxu0
    %v1112 = vadd.f32 0.0, %v1111
    %1113 = vmatmul.f32.gmra.mxu0 %v1074
    %v1114 = vpop.f32.mrf.mxu0
    %v1115 = vadd.f32 0.0, %v1114
    %1116 = vmatmul.f32.gmra.mxu0 %v1077
    %v1117 = vpop.f32.mrf.mxu0
    %v1118 = vadd.f32 0.0, %v1117
    %1119 = vmatmul.f32.gmra.mxu0 %v1080
    %v1120 = vpop.f32.mrf.mxu0
    %v1121 = vadd.f32 0.0, %v1120
    %1122 = vmatmul.f32.gmra.mxu0 %v1083
    %v1123 = vpop.f32.mrf.mxu0
    %v1124 = vadd.f32 0.0, %v1123
    %1125 = vmatmul.f32.gmra.mxu0 %v1086
    %v1126 = vpop.f32.mrf.mxu0
    %v1127 = vadd.f32 0.0, %v1126
    %1128 = vdwg.mxu0
    %v1130 = vsel %vm147, %v1031, 0
    %1132 = vmatpush.msra.mxu0 0.0
    %1133 = vmatpush.msra.mxu0 0.0
    %1134 = vmatpush.msra.mxu0 0.0
    %1135 = vmatpush.msra.mxu0 0.0
    %1136 = vmatpush.msra.mxu0 0.0
    %1137 = vmatpush.msra.mxu0 0.0
    %1138 = vmatpush.msra.mxu0 0.0
    %1139 = vmatpush.msra.mxu0 0.0
    %1140 = vmatpush.msra.mxu0 %v40
    %1141 = vmatpush.msra.mxu0 %v39
    %1142 = vmatpush.msra.mxu0 %v38
    %1143 = vmatpush.msra.mxu0 %v37
    %1144 = vmatpush.msra.mxu0 %v36
    %1145 = vmatpush.msra.mxu0 %v35
    %1146 = vmatpush.msra.mxu0 %v34
    %1147 = vmatpush.msra.mxu0 %v33
    %1148 = vmatmul.f32.gmra.mxu0 %v1130
    %v1149 = vpop.f32.mrf.mxu0
    %v1150 = vadd.f32 0.0, %v1149
    %1151 = vdwg.mxu0
    %v1153 = vsel %vm171, %v971, 0
    %1155 = vmatpush.xpose.msra.mxu0 0.0
    %1156 = vmatpush.xpose.msra.mxu0 0.0
    %1157 = vmatpush.xpose.msra.mxu0 0.0
    %1158 = vmatpush.xpose.msra.mxu0 0.0
    %1159 = vmatpush.xpose.msra.mxu0 0.0
    %1160 = vmatpush.xpose.msra.mxu0 0.0
    %1161 = vmatpush.xpose.msra.mxu0 0.0
    %1162 = vmatpush.xpose.msra.mxu0 0.0
    %1163 = vmatpush.xpose.msra.mxu0 %v197
    %1164 = vmatpush.xpose.msra.mxu0 %v194
    %1165 = vmatpush.xpose.msra.mxu0 %v191
    %1166 = vmatpush.xpose.msra.mxu0 %v188
    %1167 = vmatpush.xpose.msra.mxu0 %v185
    %1168 = vmatpush.xpose.msra.mxu0 %v182
    %1169 = vmatpush.xpose.msra.mxu0 %v179
    %1170 = vmatpush.xpose.msra.mxu0 %v176
    %1171 = vmatmul.f32.gmra.mxu0 %v1153
    %v1172 = vpop.f32.mrf.mxu0
    %v1173 = vadd.f32 0.0, %v1172
    %1174 = vdwg.mxu0
    %1175 = vmatpush.msra.mxu0 0.0
    %1176 = vmatpush.msra.mxu0 0.0
    %1177 = vmatpush.msra.mxu0 0.0
    %1178 = vmatpush.msra.mxu0 0.0
    %1179 = vmatpush.msra.mxu0 0.0
    %1180 = vmatpush.msra.mxu0 0.0
    %1181 = vmatpush.msra.mxu0 0.0
    %1182 = vmatpush.msra.mxu0 0.0
    %1183 = vmatpush.msra.mxu0 %v1127
    %1184 = vmatpush.msra.mxu0 %v1124
    %1185 = vmatpush.msra.mxu0 %v1121
    %1186 = vmatpush.msra.mxu0 %v1118
    %1187 = vmatpush.msra.mxu0 %v1115
    %1188 = vmatpush.msra.mxu0 %v1112
    %1189 = vmatpush.msra.mxu0 %v1109
    %1190 = vmatpush.msra.mxu0 %v1106
    %1191 = vmatmul.f32.gmra.mxu0 %v1130
    %v1192 = vpop.f32.mrf.mxu0
    %v1193 = vadd.f32 2e-08, %v1192
    %1194 = vdwg.mxu0
    %v1195 = vrcp.pop %v1193
    %v1196 = vmul.f32 %v1193, %v1195
    %v1197 = vsub.f32 1.0, %v1196
    %v1198 = vmul.f32 %v1195, %v1197
    %v1199 = vadd.f32 %v1195, %v1198
    %vm1200 = vweird.f32 %v1193
    %vm1201 = vweird.f32 %v1195
    %vm1202 = vmor %vm1200, %vm1201
    %v1203 = vsel %vm1202, %v1195, %v1199
    %v1204 = vand.u32 2147483647, %v1193
    %vm1205 = vcmp.eq.f32.partialorder %v1204, 8.507059e+37
    %v1206 = vand.u32 %v1193, 2147483648
    %v1207 = vor.u32 1.1754944e-38, %v1206
    %v1208 = vsel %vm1205, %v1207, %v1203
    %v1209 = vmul.f32 %v1150, %v1208
    %v1210 = vmul.f32 %v971, %v1209
    %v1212 = vsel %vm171, %v1106, 0
    %v1215 = vsel %vm171, %v1109, 0
    %v1218 = vsel %vm171, %v1112, 0
    %v1221 = vsel %vm171, %v1115, 0
    %v1224 = vsel %vm171, %v1118, 0
    %v1227 = vsel %vm171, %v1121, 0
    %v1230 = vsel %vm171, %v1124, 0
    %v1233 = vsel %vm171, %v1127, 0
    %1235 = vmatpush.xpose.msra.mxu0 0.0
    %1236 = vmatpush.xpose.msra.mxu0 0.0
    %1237 = vmatpush.xpose.msra.mxu0 0.0
    %1238 = vmatpush.xpose.msra.mxu0 0.0
    %1239 = vmatpush.xpose.msra.mxu0 0.0
    %1240 = vmatpush.xpose.msra.mxu0 0.0
    %1241 = vmatpush.xpose.msra.mxu0 0.0
    %1242 = vmatpush.xpose.msra.mxu0 0.0
    %1243 = vmatpush.xpose.msra.mxu0 %v1233
    %1244 = vmatpush.xpose.msra.mxu0 %v1230
    %1245 = vmatpush.xpose.msra.mxu0 %v1227
    %1246 = vmatpush.xpose.msra.mxu0 %v1224
    %1247 = vmatpush.xpose.msra.mxu0 %v1221
    %1248 = vmatpush.xpose.msra.mxu0 %v1218
    %1249 = vmatpush.xpose.msra.mxu0 %v1215
    %1250 = vmatpush.xpose.msra.mxu0 %v1212
    %1251 = vmatmul.f32.gmra.mxu0 %v1153
    %v1252 = vpop.f32.mrf.mxu0
    %v1253 = vadd.f32 2e-08, %v1252
    %1254 = vdwg.mxu0
    %v1255 = vrcp.pop %v1253
    %v1256 = vmul.f32 %v1253, %v1255
    %v1257 = vsub.f32 1.0, %v1256
    %v1258 = vmul.f32 %v1255, %v1257
    %v1259 = vadd.f32 %v1255, %v1258
    %vm1260 = vweird.f32 %v1253
    %vm1261 = vweird.f32 %v1255
    %vm1262 = vmor %vm1260, %vm1261
    %v1263 = vsel %vm1262, %v1255, %v1259
    %v1264 = vand.u32 2147483647, %v1253
    %vm1265 = vcmp.eq.f32.partialorder %v1264, 8.507059e+37
    %v1266 = vand.u32 %v1253, 2147483648
    %v1267 = vor.u32 1.1754944e-38, %v1266
    %v1268 = vsel %vm1265, %v1267, %v1263
    %v1269 = vmul.f32 %v1173, %v1268
    %v1270 = vmul.f32 %v1031, %v1269
    %1271 = vxpose.xlu0.b32.start [1/16] %v1270, 128
    %1272 = vxpose.xlu0.b32.cont [2/16] 0.0, 128
    %1273 = vxpose.xlu0.b32.cont [3/16] 0.0, 128
    %1274 = vxpose.xlu0.b32.cont [4/16] 0.0, 128
    %1275 = vxpose.xlu0.b32.cont [5/16] 0.0, 128
    %1276 = vxpose.xlu0.b32.cont [6/16] 0.0, 128
    %1277 = vxpose.xlu0.b32.cont [7/16] 0.0, 128
    %1278 = vxpose.xlu0.b32.cont [8/16] 0.0, 128
    %1279 = vxpose.xlu0.b32.cont [9/16] 0.0, 128
    %1280 = vxpose.xlu0.b32.cont [10/16] 0.0, 128
    %1281 = vxpose.xlu0.b32.cont [11/16] 0.0, 128
    %1282 = vxpose.xlu0.b32.cont [12/16] 0.0, 128
    %1283 = vxpose.xlu0.b32.cont [13/16] 0.0, 128
    %1284 = vxpose.xlu0.b32.cont [14/16] 0.0, 128
    %1285 = vxpose.xlu0.b32.cont [15/16] 0.0, 128
    %1286 = vxpose.xlu0.b32.end [16/16] 0.0, 128
    %v1287 = vpop.trf.xlu0
    %v1288 = vpop.trf.xlu0
    %v1289 = vpop.trf.xlu0
    %v1290 = vpop.trf.xlu0
    %v1291 = vpop.trf.xlu0
    %v1292 = vpop.trf.xlu0
    %v1293 = vpop.trf.xlu0
    %v1294 = vpop.trf.xlu0
    %v1295 = vpop.trf.xlu0
    %v1296 = vpop.trf.xlu0
    %v1297 = vpop.trf.xlu0
    %v1298 = vpop.trf.xlu0
    %v1299 = vpop.trf.xlu0
    %v1300 = vpop.trf.xlu0
    %v1301 = vpop.trf.xlu0
    %v1302 = vpop.trf.xlu0
    %v1304 = vsel %vm81, %v1287, 0
    %v1307 = vsel %vm81, %v1288, 0
    %v1310 = vsel %vm81, %v1289, 0
    %v1313 = vsel %vm81, %v1290, 0
    %v1316 = vsel %vm81, %v1291, 0
    %v1319 = vsel %vm81, %v1292, 0
    %v1322 = vsel %vm81, %v1293, 0
    %v1325 = vsel %vm81, %v1294, 0
    %1327 = vmatpush.msra.mxu0 0.0
    %1328 = vmatpush.msra.mxu0 0.0
    %1329 = vmatpush.msra.mxu0 0.0
    %1330 = vmatpush.msra.mxu0 0.0
    %1331 = vmatpush.msra.mxu0 0.0
    %1332 = vmatpush.msra.mxu0 0.0
    %1333 = vmatpush.msra.mxu0 0.0
    %1334 = vmatpush.msra.mxu0 0.0
    %1335 = vmatpush.msra.mxu0 0.0
    %1336 = vmatpush.msra.mxu0 0.0
    %1337 = vmatpush.msra.mxu0 0.0
    %1338 = vmatpush.msra.mxu0 0.0
    %1339 = vmatpush.msra.mxu0 0.0
    %1340 = vmatpush.msra.mxu0 0.0
    %1341 = vmatpush.msra.mxu0 0.0
    %1342 = vmatpush.msra.mxu0 %v1210
    %1343 = vmatmul.f32.gmra.mxu0 %v1304
    %v1344 = vpop.f32.mrf.mxu0
    %v1345 = vadd.f32 0.0, %v1344
    %1346 = vmatmul.f32.gmra.mxu0 %v1307
    %v1347 = vpop.f32.mrf.mxu0
    %v1348 = vadd.f32 0.0, %v1347
    %1349 = vmatmul.f32.gmra.mxu0 %v1310
    %v1350 = vpop.f32.mrf.mxu0
    %v1351 = vadd.f32 0.0, %v1350
    %1352 = vmatmul.f32.gmra.mxu0 %v1313
    %v1353 = vpop.f32.mrf.mxu0
    %v1354 = vadd.f32 0.0, %v1353
    %1355 = vmatmul.f32.gmra.mxu0 %v1316
    %v1356 = vpop.f32.mrf.mxu0
    %v1357 = vadd.f32 0.0, %v1356
    %1358 = vmatmul.f32.gmra.mxu0 %v1319
    %v1359 = vpop.f32.mrf.mxu0
    %v1360 = vadd.f32 0.0, %v1359
    %1361 = vmatmul.f32.gmra.mxu0 %v1322
    %v1362 = vpop.f32.mrf.mxu0
    %v1363 = vadd.f32 0.0, %v1362
    %1364 = vmatmul.f32.gmra.mxu0 %v1325
    %v1365 = vpop.f32.mrf.mxu0
    %v1366 = vadd.f32 0.0, %v1365
    %1367 = vdwg.mxu0
    %v1369 = vsel %vm147, %v1270, 0
    %1371 = vmatpush.msra.mxu0 0.0
    %1372 = vmatpush.msra.mxu0 0.0
    %1373 = vmatpush.msra.mxu0 0.0
    %1374 = vmatpush.msra.mxu0 0.0
    %1375 = vmatpush.msra.mxu0 0.0
    %1376 = vmatpush.msra.mxu0 0.0
    %1377 = vmatpush.msra.mxu0 0.0
    %1378 = vmatpush.msra.mxu0 0.0
    %1379 = vmatpush.msra.mxu0 %v40
    %1380 = vmatpush.msra.mxu0 %v39
    %1381 = vmatpush.msra.mxu0 %v38
    %1382 = vmatpush.msra.mxu0 %v37
    %1383 = vmatpush.msra.mxu0 %v36
    %1384 = vmatpush.msra.mxu0 %v35
    %1385 = vmatpush.msra.mxu0 %v34
    %1386 = vmatpush.msra.mxu0 %v33
    %1387 = vmatmul.f32.gmra.mxu0 %v1369
    %v1388 = vpop.f32.mrf.mxu0
    %v1389 = vadd.f32 0.0, %v1388
    %1390 = vdwg.mxu0
    %v1392 = vsel %vm171, %v1210, 0
    %1394 = vmatpush.xpose.msra.mxu0 0.0
    %1395 = vmatpush.xpose.msra.mxu0 0.0
    %1396 = vmatpush.xpose.msra.mxu0 0.0
    %1397 = vmatpush.xpose.msra.mxu0 0.0
    %1398 = vmatpush.xpose.msra.mxu0 0.0
    %1399 = vmatpush.xpose.msra.mxu0 0.0
    %1400 = vmatpush.xpose.msra.mxu0 0.0
    %1401 = vmatpush.xpose.msra.mxu0 0.0
    %1402 = vmatpush.xpose.msra.mxu0 %v197
    %1403 = vmatpush.xpose.msra.mxu0 %v194
    %1404 = vmatpush.xpose.msra.mxu0 %v191
    %1405 = vmatpush.xpose.msra.mxu0 %v188
    %1406 = vmatpush.xpose.msra.mxu0 %v185
    %1407 = vmatpush.xpose.msra.mxu0 %v182
    %1408 = vmatpush.xpose.msra.mxu0 %v179
    %1409 = vmatpush.xpose.msra.mxu0 %v176
    %1410 = vmatmul.f32.gmra.mxu0 %v1392
    %v1411 = vpop.f32.mrf.mxu0
    %v1412 = vadd.f32 0.0, %v1411
    %1413 = vdwg.mxu0
    %1414 = vmatpush.msra.mxu0 0.0
    %1415 = vmatpush.msra.mxu0 0.0
    %1416 = vmatpush.msra.mxu0 0.0
    %1417 = vmatpush.msra.mxu0 0.0
    %1418 = vmatpush.msra.mxu0 0.0
    %1419 = vmatpush.msra.mxu0 0.0
    %1420 = vmatpush.msra.mxu0 0.0
    %1421 = vmatpush.msra.mxu0 0.0
    %1422 = vmatpush.msra.mxu0 %v1366
    %1423 = vmatpush.msra.mxu0 %v1363
    %1424 = vmatpush.msra.mxu0 %v1360
    %1425 = vmatpush.msra.mxu0 %v1357
    %1426 = vmatpush.msra.mxu0 %v1354
    %1427 = vmatpush.msra.mxu0 %v1351
    %1428 = vmatpush.msra.mxu0 %v1348
    %1429 = vmatpush.msra.mxu0 %v1345
    %1430 = vmatmul.f32.gmra.mxu0 %v1369
    %v1431 = vpop.f32.mrf.mxu0
    %v1432 = vadd.f32 2e-08, %v1431
    %1433 = vdwg.mxu0
    %v1434 = vrcp.pop %v1432
    %v1435 = vmul.f32 %v1432, %v1434
    %v1436 = vsub.f32 1.0, %v1435
    %v1437 = vmul.f32 %v1434, %v1436
    %v1438 = vadd.f32 %v1434, %v1437
    %vm1439 = vweird.f32 %v1432
    %vm1440 = vweird.f32 %v1434
    %vm1441 = vmor %vm1439, %vm1440
    %v1442 = vsel %vm1441, %v1434, %v1438
    %v1443 = vand.u32 2147483647, %v1432
    %vm1444 = vcmp.eq.f32.partialorder %v1443, 8.507059e+37
    %v1445 = vand.u32 %v1432, 2147483648
    %v1446 = vor.u32 1.1754944e-38, %v1445
    %v1447 = vsel %vm1444, %v1446, %v1442
    %v1448 = vmul.f32 %v1389, %v1447
    %v1449 = vmul.f32 %v1210, %v1448
    %v1451 = vsel %vm171, %v1345, 0
    %v1454 = vsel %vm171, %v1348, 0
    %v1457 = vsel %vm171, %v1351, 0
    %v1460 = vsel %vm171, %v1354, 0
    %v1463 = vsel %vm171, %v1357, 0
    %v1466 = vsel %vm171, %v1360, 0
    %v1469 = vsel %vm171, %v1363, 0
    %v1472 = vsel %vm171, %v1366, 0
    %1474 = vmatpush.xpose.msra.mxu0 0.0
    %1475 = vmatpush.xpose.msra.mxu0 0.0
    %1476 = vmatpush.xpose.msra.mxu0 0.0
    %1477 = vmatpush.xpose.msra.mxu0 0.0
    %1478 = vmatpush.xpose.msra.mxu0 0.0
    %1479 = vmatpush.xpose.msra.mxu0 0.0
    %1480 = vmatpush.xpose.msra.mxu0 0.0
    %1481 = vmatpush.xpose.msra.mxu0 0.0
    %1482 = vmatpush.xpose.msra.mxu0 %v1472
    %1483 = vmatpush.xpose.msra.mxu0 %v1469
    %1484 = vmatpush.xpose.msra.mxu0 %v1466
    %1485 = vmatpush.xpose.msra.mxu0 %v1463
    %1486 = vmatpush.xpose.msra.mxu0 %v1460
    %1487 = vmatpush.xpose.msra.mxu0 %v1457
    %1488 = vmatpush.xpose.msra.mxu0 %v1454
    %1489 = vmatpush.xpose.msra.mxu0 %v1451
    %1490 = vmatmul.f32.gmra.mxu0 %v1392
    %v1491 = vpop.f32.mrf.mxu0
    %v1492 = vadd.f32 2e-08, %v1491
    %1493 = vdwg.mxu0
    %v1494 = vrcp.pop %v1492
    %v1495 = vmul.f32 %v1492, %v1494
    %v1496 = vsub.f32 1.0, %v1495
    %v1497 = vmul.f32 %v1494, %v1496
    %v1498 = vadd.f32 %v1494, %v1497
    %vm1499 = vweird.f32 %v1492
    %vm1500 = vweird.f32 %v1494
    %vm1501 = vmor %vm1499, %vm1500
    %v1502 = vsel %vm1501, %v1494, %v1498
    %v1503 = vand.u32 2147483647, %v1492
    %vm1504 = vcmp.eq.f32.partialorder %v1503, 8.507059e+37
    %v1505 = vand.u32 %v1492, 2147483648
    %v1506 = vor.u32 1.1754944e-38, %v1505
    %v1507 = vsel %vm1504, %v1506, %v1502
    %v1508 = vmul.f32 %v1412, %v1507
    %v1509 = vmul.f32 %v1270, %v1508
    %1510 = vxpose.xlu0.b32.start [1/16] %v1509, 128
    %1511 = vxpose.xlu0.b32.cont [2/16] 0.0, 128
    %1512 = vxpose.xlu0.b32.cont [3/16] 0.0, 128
    %1513 = vxpose.xlu0.b32.cont [4/16] 0.0, 128
    %1514 = vxpose.xlu0.b32.cont [5/16] 0.0, 128
    %1515 = vxpose.xlu0.b32.cont [6/16] 0.0, 128
    %1516 = vxpose.xlu0.b32.cont [7/16] 0.0, 128
    %1517 = vxpose.xlu0.b32.cont [8/16] 0.0, 128
    %1518 = vxpose.xlu0.b32.cont [9/16] 0.0, 128
    %1519 = vxpose.xlu0.b32.cont [10/16] 0.0, 128
    %1520 = vxpose.xlu0.b32.cont [11/16] 0.0, 128
    %1521 = vxpose.xlu0.b32.cont [12/16] 0.0, 128
    %1522 = vxpose.xlu0.b32.cont [13/16] 0.0, 128
    %1523 = vxpose.xlu0.b32.cont [14/16] 0.0, 128
    %1524 = vxpose.xlu0.b32.cont [15/16] 0.0, 128
    %1525 = vxpose.xlu0.b32.end [16/16] 0.0, 128
    %v1526 = vpop.trf.xlu0
    %v1527 = vpop.trf.xlu0
    %v1528 = vpop.trf.xlu0
    %v1529 = vpop.trf.xlu0
    %v1530 = vpop.trf.xlu0
    %v1531 = vpop.trf.xlu0
    %v1532 = vpop.trf.xlu0
    %v1533 = vpop.trf.xlu0
    %v1534 = vpop.trf.xlu0
    %v1535 = vpop.trf.xlu0
    %v1536 = vpop.trf.xlu0
    %v1537 = vpop.trf.xlu0
    %v1538 = vpop.trf.xlu0
    %v1539 = vpop.trf.xlu0
    %v1540 = vpop.trf.xlu0
    %v1541 = vpop.trf.xlu0
    %v1543 = vsel %vm81, %v1526, 0
    %v1546 = vsel %vm81, %v1527, 0
    %v1549 = vsel %vm81, %v1528, 0
    %v1552 = vsel %vm81, %v1529, 0
    %v1555 = vsel %vm81, %v1530, 0
    %v1558 = vsel %vm81, %v1531, 0
    %v1561 = vsel %vm81, %v1532, 0
    %v1564 = vsel %vm81, %v1533, 0
    %1566 = vmatpush.msra.mxu0 0.0
    %1567 = vmatpush.msra.mxu0 0.0
    %1568 = vmatpush.msra.mxu0 0.0
    %1569 = vmatpush.msra.mxu0 0.0
    %1570 = vmatpush.msra.mxu0 0.0
    %1571 = vmatpush.msra.mxu0 0.0
    %1572 = vmatpush.msra.mxu0 0.0
    %1573 = vmatpush.msra.mxu0 0.0
    %1574 = vmatpush.msra.mxu0 0.0
    %1575 = vmatpush.msra.mxu0 0.0
    %1576 = vmatpush.msra.mxu0 0.0
    %1577 = vmatpush.msra.mxu0 0.0
    %1578 = vmatpush.msra.mxu0 0.0
    %1579 = vmatpush.msra.mxu0 0.0
    %1580 = vmatpush.msra.mxu0 0.0
    %1581 = vmatpush.msra.mxu0 %v1449
    %1582 = vmatmul.f32.gmra.mxu0 %v1543
    %v1583 = vpop.f32.mrf.mxu0
    %v1584 = vadd.f32 0.0, %v1583
    %1585 = vmatmul.f32.gmra.mxu0 %v1546
    %v1586 = vpop.f32.mrf.mxu0
    %v1587 = vadd.f32 0.0, %v1586
    %1588 = vmatmul.f32.gmra.mxu0 %v1549
    %v1589 = vpop.f32.mrf.mxu0
    %v1590 = vadd.f32 0.0, %v1589
    %1591 = vmatmul.f32.gmra.mxu0 %v1552
    %v1592 = vpop.f32.mrf.mxu0
    %v1593 = vadd.f32 0.0, %v1592
    %1594 = vmatmul.f32.gmra.mxu0 %v1555
    %v1595 = vpop.f32.mrf.mxu0
    %v1596 = vadd.f32 0.0, %v1595
    %1597 = vmatmul.f32.gmra.mxu0 %v1558
    %v1598 = vpop.f32.mrf.mxu0
    %v1599 = vadd.f32 0.0, %v1598
    %1600 = vmatmul.f32.gmra.mxu0 %v1561
    %v1601 = vpop.f32.mrf.mxu0
    %v1602 = vadd.f32 0.0, %v1601
    %1603 = vmatmul.f32.gmra.mxu0 %v1564
    %v1604 = vpop.f32.mrf.mxu0
    %v1605 = vadd.f32 0.0, %v1604
    %1606 = vdwg.mxu0
    %1607 = vst.msk [vmem:[#allocation2] sm:$0xff] %vm171, %v1584
    %1608 = vst.msk [vmem:[#allocation2 + $0x8] sm:$0xff] %vm171, %v1587
    %1609 = vst.msk [vmem:[#allocation2 + $0x10] sm:$0xff] %vm171, %v1590
    %1610 = vst.msk [vmem:[#allocation2 + $0x18] sm:$0xff] %vm171, %v1593
    %1611 = vst.msk [vmem:[#allocation2 + $0x20] sm:$0xff] %vm171, %v1596
    %1612 = vst.msk [vmem:[#allocation2 + $0x28] sm:$0xff] %vm171, %v1599
    %1613 = vst.msk [vmem:[#allocation2 + $0x30] sm:$0xff] %vm171, %v1602
    %1614 = vst.msk [vmem:[#allocation2 + $0x38] sm:$0xff] %vm171, %v1605
    %1615 = vmatpush.msra.mxu0 0.0
    %1616 = vmatpush.msra.mxu0 0.0
    %1617 = vmatpush.msra.mxu0 0.0
    %1618 = vmatpush.msra.mxu0 0.0
    %1619 = vmatpush.msra.mxu0 0.0
    %1620 = vmatpush.msra.mxu0 0.0
    %1621 = vmatpush.msra.mxu0 0.0
    %1622 = vmatpush.msra.mxu0 0.0
    %1623 = vmatpush.msra.mxu0 %v48
    %1624 = vmatpush.msra.mxu0 %v47
    %1625 = vmatpush.msra.mxu0 %v46
    %1626 = vmatpush.msra.mxu0 %v45
    %1627 = vmatpush.msra.mxu0 %v44
    %1628 = vmatpush.msra.mxu0 %v43
    %1629 = vmatpush.msra.mxu0 %v42
    %1630 = vmatpush.msra.mxu0 %v41
    %1631 = vmatmul.f32.gmra.mxu0 %v149
    %v1632 = vpop.f32.mrf.mxu0
    %v1633 = vadd.f32 0.0, %v1632
    %1634 = vdwg.mxu0
    %v1636 = vsel %vm171, %v41, 0
    %v1639 = vsel %vm171, %v42, 0
    %v1642 = vsel %vm171, %v43, 0
    %v1645 = vsel %vm171, %v44, 0
    %v1648 = vsel %vm171, %v45, 0
    %v1651 = vsel %vm171, %v46, 0
    %v1654 = vsel %vm171, %v47, 0
    %v1657 = vsel %vm171, %v48, 0
    %1659 = vmatpush.xpose.msra.mxu0 0.0
    %1660 = vmatpush.xpose.msra.mxu0 0.0
    %1661 = vmatpush.xpose.msra.mxu0 0.0
    %1662 = vmatpush.xpose.msra.mxu0 0.0
    %1663 = vmatpush.xpose.msra.mxu0 0.0
    %1664 = vmatpush.xpose.msra.mxu0 0.0
    %1665 = vmatpush.xpose.msra.mxu0 0.0
    %1666 = vmatpush.xpose.msra.mxu0 0.0
    %1667 = vmatpush.xpose.msra.mxu0 %v1657
    %1668 = vmatpush.xpose.msra.mxu0 %v1654
    %1669 = vmatpush.xpose.msra.mxu0 %v1651
    %1670 = vmatpush.xpose.msra.mxu0 %v1648
    %1671 = vmatpush.xpose.msra.mxu0 %v1645
    %1672 = vmatpush.xpose.msra.mxu0 %v1642
    %1673 = vmatpush.xpose.msra.mxu0 %v1639
    %1674 = vmatpush.xpose.msra.mxu0 %v1636
    %1675 = vmatmul.f32.gmra.mxu0 %v173
    %v1676 = vpop.f32.mrf.mxu0
    %v1677 = vadd.f32 0.0, %v1676
    %1678 = vdwg.mxu0
    %v1679 = vmul.f32 %v1633, %v252
    %v1680 = vmul.f32 %v16, %v1679
    %v1681 = vmul.f32 %v1677, %v312
    %v1682 = vmul.f32 %v15, %v1681
    %1683 = vxpose.xlu0.b32.start [1/16] %v1682, 128
    %1684 = vxpose.xlu0.b32.cont [2/16] 0.0, 128
    %1685 = vxpose.xlu0.b32.cont [3/16] 0.0, 128
    %1686 = vxpose.xlu0.b32.cont [4/16] 0.0, 128
    %1687 = vxpose.xlu0.b32.cont [5/16] 0.0, 128
    %1688 = vxpose.xlu0.b32.cont [6/16] 0.0, 128
    %1689 = vxpose.xlu0.b32.cont [7/16] 0.0, 128
    %1690 = vxpose.xlu0.b32.cont [8/16] 0.0, 128
    %1691 = vxpose.xlu0.b32.cont [9/16] 0.0, 128
    %1692 = vxpose.xlu0.b32.cont [10/16] 0.0, 128
    %1693 = vxpose.xlu0.b32.cont [11/16] 0.0, 128
    %1694 = vxpose.xlu0.b32.cont [12/16] 0.0, 128
    %1695 = vxpose.xlu0.b32.cont [13/16] 0.0, 128
    %1696 = vxpose.xlu0.b32.cont [14/16] 0.0, 128
    %1697 = vxpose.xlu0.b32.cont [15/16] 0.0, 128
    %1698 = vxpose.xlu0.b32.end [16/16] 0.0, 128
    %v1699 = vpop.trf.xlu0
    %v1700 = vpop.trf.xlu0
    %v1701 = vpop.trf.xlu0
    %v1702 = vpop.trf.xlu0
    %v1703 = vpop.trf.xlu0
    %v1704 = vpop.trf.xlu0
    %v1705 = vpop.trf.xlu0
    %v1706 = vpop.trf.xlu0
    %v1707 = vpop.trf.xlu0
    %v1708 = vpop.trf.xlu0
    %v1709 = vpop.trf.xlu0
    %v1710 = vpop.trf.xlu0
    %v1711 = vpop.trf.xlu0
    %v1712 = vpop.trf.xlu0
    %v1713 = vpop.trf.xlu0
    %v1714 = vpop.trf.xlu0
    %v1716 = vsel %vm81, %v1699, 0
    %v1719 = vsel %vm81, %v1700, 0
    %v1722 = vsel %vm81, %v1701, 0
    %v1725 = vsel %vm81, %v1702, 0
    %v1728 = vsel %vm81, %v1703, 0
    %v1731 = vsel %vm81, %v1704, 0
    %v1734 = vsel %vm81, %v1705, 0
    %v1737 = vsel %vm81, %v1706, 0
    %1739 = vmatpush.msra.mxu0 0.0
    %1740 = vmatpush.msra.mxu0 0.0
    %1741 = vmatpush.msra.mxu0 0.0
    %1742 = vmatpush.msra.mxu0 0.0
    %1743 = vmatpush.msra.mxu0 0.0
    %1744 = vmatpush.msra.mxu0 0.0
    %1745 = vmatpush.msra.mxu0 0.0
    %1746 = vmatpush.msra.mxu0 0.0
    %1747 = vmatpush.msra.mxu0 0.0
    %1748 = vmatpush.msra.mxu0 0.0
    %1749 = vmatpush.msra.mxu0 0.0
    %1750 = vmatpush.msra.mxu0 0.0
    %1751 = vmatpush.msra.mxu0 0.0
    %1752 = vmatpush.msra.mxu0 0.0
    %1753 = vmatpush.msra.mxu0 0.0
    %1754 = vmatpush.msra.mxu0 %v1680
    %1755 = vmatmul.f32.gmra.mxu0 %v1716
    %v1756 = vpop.f32.mrf.mxu0
    %v1757 = vadd.f32 0.0, %v1756
    %1758 = vmatmul.f32.gmra.mxu0 %v1719
    %v1759 = vpop.f32.mrf.mxu0
    %v1760 = vadd.f32 0.0, %v1759
    %1761 = vmatmul.f32.gmra.mxu0 %v1722
    %v1762 = vpop.f32.mrf.mxu0
    %v1763 = vadd.f32 0.0, %v1762
    %1764 = vmatmul.f32.gmra.mxu0 %v1725
    %v1765 = vpop.f32.mrf.mxu0
    %v1766 = vadd.f32 0.0, %v1765
    %1767 = vmatmul.f32.gmra.mxu0 %v1728
    %v1768 = vpop.f32.mrf.mxu0
    %v1769 = vadd.f32 0.0, %v1768
    %1770 = vmatmul.f32.gmra.mxu0 %v1731
    %v1771 = vpop.f32.mrf.mxu0
    %v1772 = vadd.f32 0.0, %v1771
    %1773 = vmatmul.f32.gmra.mxu0 %v1734
    %v1774 = vpop.f32.mrf.mxu0
    %v1775 = vadd.f32 0.0, %v1774
    %1776 = vmatmul.f32.gmra.mxu0 %v1737
    %v1777 = vpop.f32.mrf.mxu0
    %v1778 = vadd.f32 0.0, %v1777
    %1779 = vdwg.mxu0
    %v1781 = vsel %vm147, %v1682, 0
    %1783 = vmatpush.msra.mxu0 0.0
    %1784 = vmatpush.msra.mxu0 0.0
    %1785 = vmatpush.msra.mxu0 0.0
    %1786 = vmatpush.msra.mxu0 0.0
    %1787 = vmatpush.msra.mxu0 0.0
    %1788 = vmatpush.msra.mxu0 0.0
    %1789 = vmatpush.msra.mxu0 0.0
    %1790 = vmatpush.msra.mxu0 0.0
    %1791 = vmatpush.msra.mxu0 %v48
    %1792 = vmatpush.msra.mxu0 %v47
    %1793 = vmatpush.msra.mxu0 %v46
    %1794 = vmatpush.msra.mxu0 %v45
    %1795 = vmatpush.msra.mxu0 %v44
    %1796 = vmatpush.msra.mxu0 %v43
    %1797 = vmatpush.msra.mxu0 %v42
    %1798 = vmatpush.msra.mxu0 %v41
    %1799 = vmatmul.f32.gmra.mxu0 %v1781
    %v1800 = vpop.f32.mrf.mxu0
    %v1801 = vadd.f32 0.0, %v1800
    %1802 = vdwg.mxu0
    %v1804 = vsel %vm171, %v1680, 0
    %1806 = vmatpush.xpose.msra.mxu0 0.0
    %1807 = vmatpush.xpose.msra.mxu0 0.0
    %1808 = vmatpush.xpose.msra.mxu0 0.0
    %1809 = vmatpush.xpose.msra.mxu0 0.0
    %1810 = vmatpush.xpose.msra.mxu0 0.0
    %1811 = vmatpush.xpose.msra.mxu0 0.0
    %1812 = vmatpush.xpose.msra.mxu0 0.0
    %1813 = vmatpush.xpose.msra.mxu0 0.0
    %1814 = vmatpush.xpose.msra.mxu0 %v1657
    %1815 = vmatpush.xpose.msra.mxu0 %v1654
    %1816 = vmatpush.xpose.msra.mxu0 %v1651
    %1817 = vmatpush.xpose.msra.mxu0 %v1648
    %1818 = vmatpush.xpose.msra.mxu0 %v1645
    %1819 = vmatpush.xpose.msra.mxu0 %v1642
    %1820 = vmatpush.xpose.msra.mxu0 %v1639
    %1821 = vmatpush.xpose.msra.mxu0 %v1636
    %1822 = vmatmul.f32.gmra.mxu0 %v1804
    %v1823 = vpop.f32.mrf.mxu0
    %v1824 = vadd.f32 0.0, %v1823
    %1825 = vdwg.mxu0
    %1826 = vmatpush.msra.mxu0 0.0
    %1827 = vmatpush.msra.mxu0 0.0
    %1828 = vmatpush.msra.mxu0 0.0
    %1829 = vmatpush.msra.mxu0 0.0
    %1830 = vmatpush.msra.mxu0 0.0
    %1831 = vmatpush.msra.mxu0 0.0
    %1832 = vmatpush.msra.mxu0 0.0
    %1833 = vmatpush.msra.mxu0 0.0
    %1834 = vmatpush.msra.mxu0 %v1778
    %1835 = vmatpush.msra.mxu0 %v1775
    %1836 = vmatpush.msra.mxu0 %v1772
    %1837 = vmatpush.msra.mxu0 %v1769
    %1838 = vmatpush.msra.mxu0 %v1766
    %1839 = vmatpush.msra.mxu0 %v1763
    %1840 = vmatpush.msra.mxu0 %v1760
    %1841 = vmatpush.msra.mxu0 %v1757
    %1842 = vmatmul.f32.gmra.mxu0 %v1781
    %v1843 = vpop.f32.mrf.mxu0
    %v1844 = vadd.f32 2e-08, %v1843
    %1845 = vdwg.mxu0
    %v1846 = vrcp.pop %v1844
    %v1847 = vmul.f32 %v1844, %v1846
    %v1848 = vsub.f32 1.0, %v1847
    %v1849 = vmul.f32 %v1846, %v1848
    %v1850 = vadd.f32 %v1846, %v1849
    %vm1851 = vweird.f32 %v1844
    %vm1852 = vweird.f32 %v1846
    %vm1853 = vmor %vm1851, %vm1852
    %v1854 = vsel %vm1853, %v1846, %v1850
    %v1855 = vand.u32 2147483647, %v1844
    %vm1856 = vcmp.eq.f32.partialorder %v1855, 8.507059e+37
    %v1857 = vand.u32 %v1844, 2147483648
    %v1858 = vor.u32 1.1754944e-38, %v1857
    %v1859 = vsel %vm1856, %v1858, %v1854
    %v1860 = vmul.f32 %v1801, %v1859
    %v1861 = vmul.f32 %v1680, %v1860
    %v1863 = vsel %vm171, %v1757, 0
    %v1866 = vsel %vm171, %v1760, 0
    %v1869 = vsel %vm171, %v1763, 0
    %v1872 = vsel %vm171, %v1766, 0
    %v1875 = vsel %vm171, %v1769, 0
    %v1878 = vsel %vm171, %v1772, 0
    %v1881 = vsel %vm171, %v1775, 0
    %v1884 = vsel %vm171, %v1778, 0
    %1886 = vmatpush.xpose.msra.mxu0 0.0
    %1887 = vmatpush.xpose.msra.mxu0 0.0
    %1888 = vmatpush.xpose.msra.mxu0 0.0
    %1889 = vmatpush.xpose.msra.mxu0 0.0
    %1890 = vmatpush.xpose.msra.mxu0 0.0
    %1891 = vmatpush.xpose.msra.mxu0 0.0
    %1892 = vmatpush.xpose.msra.mxu0 0.0
    %1893 = vmatpush.xpose.msra.mxu0 0.0
    %1894 = vmatpush.xpose.msra.mxu0 %v1884
    %1895 = vmatpush.xpose.msra.mxu0 %v1881
    %1896 = vmatpush.xpose.msra.mxu0 %v1878
    %1897 = vmatpush.xpose.msra.mxu0 %v1875
    %1898 = vmatpush.xpose.msra.mxu0 %v1872
    %1899 = vmatpush.xpose.msra.mxu0 %v1869
    %1900 = vmatpush.xpose.msra.mxu0 %v1866
    %1901 = vmatpush.xpose.msra.mxu0 %v1863
    %1902 = vmatmul.f32.gmra.mxu0 %v1804
    %v1903 = vpop.f32.mrf.mxu0
    %v1904 = vadd.f32 2e-08, %v1903
    %1905 = vdwg.mxu0
    %v1906 = vrcp.pop %v1904
    %v1907 = vmul.f32 %v1904, %v1906
    %v1908 = vsub.f32 1.0, %v1907
    %v1909 = vmul.f32 %v1906, %v1908
    %v1910 = vadd.f32 %v1906, %v1909
    %vm1911 = vweird.f32 %v1904
    %vm1912 = vweird.f32 %v1906
    %vm1913 = vmor %vm1911, %vm1912
    %v1914 = vsel %vm1913, %v1906, %v1910
    %v1915 = vand.u32 2147483647, %v1904
    %vm1916 = vcmp.eq.f32.partialorder %v1915, 8.507059e+37
    %v1917 = vand.u32 %v1904, 2147483648
    %v1918 = vor.u32 1.1754944e-38, %v1917
    %v1919 = vsel %vm1916, %v1918, %v1914
    %v1920 = vmul.f32 %v1824, %v1919
    %v1921 = vmul.f32 %v1682, %v1920
    %1922 = vxpose.xlu0.b32.start [1/16] %v1921, 128
    %1923 = vxpose.xlu0.b32.cont [2/16] 0.0, 128
    %1924 = vxpose.xlu0.b32.cont [3/16] 0.0, 128
    %1925 = vxpose.xlu0.b32.cont [4/16] 0.0, 128
    %1926 = vxpose.xlu0.b32.cont [5/16] 0.0, 128
    %1927 = vxpose.xlu0.b32.cont [6/16] 0.0, 128
    %1928 = vxpose.xlu0.b32.cont [7/16] 0.0, 128
    %1929 = vxpose.xlu0.b32.cont [8/16] 0.0, 128
    %1930 = vxpose.xlu0.b32.cont [9/16] 0.0, 128
    %1931 = vxpose.xlu0.b32.cont [10/16] 0.0, 128
    %1932 = vxpose.xlu0.b32.cont [11/16] 0.0, 128
    %1933 = vxpose.xlu0.b32.cont [12/16] 0.0, 128
    %1934 = vxpose.xlu0.b32.cont [13/16] 0.0, 128
    %1935 = vxpose.xlu0.b32.cont [14/16] 0.0, 128
    %1936 = vxpose.xlu0.b32.cont [15/16] 0.0, 128
    %1937 = vxpose.xlu0.b32.end [16/16] 0.0, 128
    %v1938 = vpop.trf.xlu0
    %v1939 = vpop.trf.xlu0
    %v1940 = vpop.trf.xlu0
    %v1941 = vpop.trf.xlu0
    %v1942 = vpop.trf.xlu0
    %v1943 = vpop.trf.xlu0
    %v1944 = vpop.trf.xlu0
    %v1945 = vpop.trf.xlu0
    %v1946 = vpop.trf.xlu0
    %v1947 = vpop.trf.xlu0
    %v1948 = vpop.trf.xlu0
    %v1949 = vpop.trf.xlu0
    %v1950 = vpop.trf.xlu0
    %v1951 = vpop.trf.xlu0
    %v1952 = vpop.trf.xlu0
    %v1953 = vpop.trf.xlu0
    %v1955 = vsel %vm81, %v1938, 0
    %v1958 = vsel %vm81, %v1939, 0
    %v1961 = vsel %vm81, %v1940, 0
    %v1964 = vsel %vm81, %v1941, 0
    %v1967 = vsel %vm81, %v1942, 0
    %v1970 = vsel %vm81, %v1943, 0
    %v1973 = vsel %vm81, %v1944, 0
    %v1976 = vsel %vm81, %v1945, 0
    %1978 = vmatpush.msra.mxu0 0.0
    %1979 = vmatpush.msra.mxu0 0.0
    %1980 = vmatpush.msra.mxu0 0.0
    %1981 = vmatpush.msra.mxu0 0.0
    %1982 = vmatpush.msra.mxu0 0.0
    %1983 = vmatpush.msra.mxu0 0.0
    %1984 = vmatpush.msra.mxu0 0.0
    %1985 = vmatpush.msra.mxu0 0.0
    %1986 = vmatpush.msra.mxu0 0.0
    %1987 = vmatpush.msra.mxu0 0.0
    %1988 = vmatpush.msra.mxu0 0.0
    %1989 = vmatpush.msra.mxu0 0.0
    %1990 = vmatpush.msra.mxu0 0.0
    %1991 = vmatpush.msra.mxu0 0.0
    %1992 = vmatpush.msra.mxu0 0.0
    %1993 = vmatpush.msra.mxu0 %v1861
    %1994 = vmatmul.f32.gmra.mxu0 %v1955
    %v1995 = vpop.f32.mrf.mxu0
    %v1996 = vadd.f32 0.0, %v1995
    %1997 = vmatmul.f32.gmra.mxu0 %v1958
    %v1998 = vpop.f32.mrf.mxu0
    %v1999 = vadd.f32 0.0, %v1998
    %2000 = vmatmul.f32.gmra.mxu0 %v1961
    %v2001 = vpop.f32.mrf.mxu0
    %v2002 = vadd.f32 0.0, %v2001
    %2003 = vmatmul.f32.gmra.mxu0 %v1964
    %v2004 = vpop.f32.mrf.mxu0
    %v2005 = vadd.f32 0.0, %v2004
    %2006 = vmatmul.f32.gmra.mxu0 %v1967
    %v2007 = vpop.f32.mrf.mxu0
    %v2008 = vadd.f32 0.0, %v2007
    %2009 = vmatmul.f32.gmra.mxu0 %v1970
    %v2010 = vpop.f32.mrf.mxu0
    %v2011 = vadd.f32 0.0, %v2010
    %2012 = vmatmul.f32.gmra.mxu0 %v1973
    %v2013 = vpop.f32.mrf.mxu0
    %v2014 = vadd.f32 0.0, %v2013
    %2015 = vmatmul.f32.gmra.mxu0 %v1976
    %v2016 = vpop.f32.mrf.mxu0
    %v2017 = vadd.f32 0.0, %v2016
    %2018 = vdwg.mxu0
    %v2020 = vsel %vm147, %v1921, 0
    %2022 = vmatpush.msra.mxu0 0.0
    %2023 = vmatpush.msra.mxu0 0.0
    %2024 = vmatpush.msra.mxu0 0.0
    %2025 = vmatpush.msra.mxu0 0.0
    %2026 = vmatpush.msra.mxu0 0.0
    %2027 = vmatpush.msra.mxu0 0.0
    %2028 = vmatpush.msra.mxu0 0.0
    %2029 = vmatpush.msra.mxu0 0.0
    %2030 = vmatpush.msra.mxu0 %v48
    %2031 = vmatpush.msra.mxu0 %v47
    %2032 = vmatpush.msra.mxu0 %v46
    %2033 = vmatpush.msra.mxu0 %v45
    %2034 = vmatpush.msra.mxu0 %v44
    %2035 = vmatpush.msra.mxu0 %v43
    %2036 = vmatpush.msra.mxu0 %v42
    %2037 = vmatpush.msra.mxu0 %v41
    %2038 = vmatmul.f32.gmra.mxu0 %v2020
    %v2039 = vpop.f32.mrf.mxu0
    %v2040 = vadd.f32 0.0, %v2039
    %2041 = vdwg.mxu0
    %v2043 = vsel %vm171, %v1861, 0
    %2045 = vmatpush.xpose.msra.mxu0 0.0
    %2046 = vmatpush.xpose.msra.mxu0 0.0
    %2047 = vmatpush.xpose.msra.mxu0 0.0
    %2048 = vmatpush.xpose.msra.mxu0 0.0
    %2049 = vmatpush.xpose.msra.mxu0 0.0
    %2050 = vmatpush.xpose.msra.mxu0 0.0
    %2051 = vmatpush.xpose.msra.mxu0 0.0
    %2052 = vmatpush.xpose.msra.mxu0 0.0
    %2053 = vmatpush.xpose.msra.mxu0 %v1657
    %2054 = vmatpush.xpose.msra.mxu0 %v1654
    %2055 = vmatpush.xpose.msra.mxu0 %v1651
    %2056 = vmatpush.xpose.msra.mxu0 %v1648
    %2057 = vmatpush.xpose.msra.mxu0 %v1645
    %2058 = vmatpush.xpose.msra.mxu0 %v1642
    %2059 = vmatpush.xpose.msra.mxu0 %v1639
    %2060 = vmatpush.xpose.msra.mxu0 %v1636
    %2061 = vmatmul.f32.gmra.mxu0 %v2043
    %v2062 = vpop.f32.mrf.mxu0
    %v2063 = vadd.f32 0.0, %v2062
    %2064 = vdwg.mxu0
    %2065 = vmatpush.msra.mxu0 0.0
    %2066 = vmatpush.msra.mxu0 0.0
    %2067 = vmatpush.msra.mxu0 0.0
    %2068 = vmatpush.msra.mxu0 0.0
    %2069 = vmatpush.msra.mxu0 0.0
    %2070 = vmatpush.msra.mxu0 0.0
    %2071 = vmatpush.msra.mxu0 0.0
    %2072 = vmatpush.msra.mxu0 0.0
    %2073 = vmatpush.msra.mxu0 %v2017
    %2074 = vmatpush.msra.mxu0 %v2014
    %2075 = vmatpush.msra.mxu0 %v2011
    %2076 = vmatpush.msra.mxu0 %v2008
    %2077 = vmatpush.msra.mxu0 %v2005
    %2078 = vmatpush.msra.mxu0 %v2002
    %2079 = vmatpush.msra.mxu0 %v1999
    %2080 = vmatpush.msra.mxu0 %v1996
    %2081 = vmatmul.f32.gmra.mxu0 %v2020
    %v2082 = vpop.f32.mrf.mxu0
    %v2083 = vadd.f32 2e-08, %v2082
    %2084 = vdwg.mxu0
    %v2085 = vrcp.pop %v2083
    %v2086 = vmul.f32 %v2083, %v2085
    %v2087 = vsub.f32 1.0, %v2086
    %v2088 = vmul.f32 %v2085, %v2087
    %v2089 = vadd.f32 %v2085, %v2088
    %vm2090 = vweird.f32 %v2083
    %vm2091 = vweird.f32 %v2085
    %vm2092 = vmor %vm2090, %vm2091
    %v2093 = vsel %vm2092, %v2085, %v2089
    %v2094 = vand.u32 2147483647, %v2083
    %vm2095 = vcmp.eq.f32.partialorder %v2094, 8.507059e+37
    %v2096 = vand.u32 %v2083, 2147483648
    %v2097 = vor.u32 1.1754944e-38, %v2096
    %v2098 = vsel %vm2095, %v2097, %v2093
    %v2099 = vmul.f32 %v2040, %v2098
    %v2100 = vmul.f32 %v1861, %v2099
    %v2102 = vsel %vm171, %v1996, 0
    %v2105 = vsel %vm171, %v1999, 0
    %v2108 = vsel %vm171, %v2002, 0
    %v2111 = vsel %vm171, %v2005, 0
    %v2114 = vsel %vm171, %v2008, 0
    %v2117 = vsel %vm171, %v2011, 0
    %v2120 = vsel %vm171, %v2014, 0
    %v2123 = vsel %vm171, %v2017, 0
    %2125 = vmatpush.xpose.msra.mxu0 0.0
    %2126 = vmatpush.xpose.msra.mxu0 0.0
    %2127 = vmatpush.xpose.msra.mxu0 0.0
    %2128 = vmatpush.xpose.msra.mxu0 0.0
    %2129 = vmatpush.xpose.msra.mxu0 0.0
    %2130 = vmatpush.xpose.msra.mxu0 0.0
    %2131 = vmatpush.xpose.msra.mxu0 0.0
    %2132 = vmatpush.xpose.msra.mxu0 0.0
    %2133 = vmatpush.xpose.msra.mxu0 %v2123
    %2134 = vmatpush.xpose.msra.mxu0 %v2120
    %2135 = vmatpush.xpose.msra.mxu0 %v2117
    %2136 = vmatpush.xpose.msra.mxu0 %v2114
    %2137 = vmatpush.xpose.msra.mxu0 %v2111
    %2138 = vmatpush.xpose.msra.mxu0 %v2108
    %2139 = vmatpush.xpose.msra.mxu0 %v2105
    %2140 = vmatpush.xpose.msra.mxu0 %v2102
    %2141 = vmatmul.f32.gmra.mxu0 %v2043
    %v2142 = vpop.f32.mrf.mxu0
    %v2143 = vadd.f32 2e-08, %v2142
    %2144 = vdwg.mxu0
    %v2145 = vrcp.pop %v2143
    %v2146 = vmul.f32 %v2143, %v2145
    %v2147 = vsub.f32 1.0, %v2146
    %v2148 = vmul.f32 %v2145, %v2147
    %v2149 = vadd.f32 %v2145, %v2148
    %vm2150 = vweird.f32 %v2143
    %vm2151 = vweird.f32 %v2145
    %vm2152 = vmor %vm2150, %vm2151
    %v2153 = vsel %vm2152, %v2145, %v2149
    %v2154 = vand.u32 2147483647, %v2143
    %vm2155 = vcmp.eq.f32.partialorder %v2154, 8.507059e+37
    %v2156 = vand.u32 %v2143, 2147483648
    %v2157 = vor.u32 1.1754944e-38, %v2156
    %v2158 = vsel %vm2155, %v2157, %v2153
    %v2159 = vmul.f32 %v2063, %v2158
    %v2160 = vmul.f32 %v1921, %v2159
    %2161 = vxpose.xlu0.b32.start [1/16] %v2160, 128
    %2162 = vxpose.xlu0.b32.cont [2/16] 0.0, 128
    %2163 = vxpose.xlu0.b32.cont [3/16] 0.0, 128
    %2164 = vxpose.xlu0.b32.cont [4/16] 0.0, 128
    %2165 = vxpose.xlu0.b32.cont [5/16] 0.0, 128
    %2166 = vxpose.xlu0.b32.cont [6/16] 0.0, 128
    %2167 = vxpose.xlu0.b32.cont [7/16] 0.0, 128
    %2168 = vxpose.xlu0.b32.cont [8/16] 0.0, 128
    %2169 = vxpose.xlu0.b32.cont [9/16] 0.0, 128
    %2170 = vxpose.xlu0.b32.cont [10/16] 0.0, 128
    %2171 = vxpose.xlu0.b32.cont [11/16] 0.0, 128
    %2172 = vxpose.xlu0.b32.cont [12/16] 0.0, 128
    %2173 = vxpose.xlu0.b32.cont [13/16] 0.0, 128
    %2174 = vxpose.xlu0.b32.cont [14/16] 0.0, 128
    %2175 = vxpose.xlu0.b32.cont [15/16] 0.0, 128
    %2176 = vxpose.xlu0.b32.end [16/16] 0.0, 128
    %v2177 = vpop.trf.xlu0
    %v2178 = vpop.trf.xlu0
    %v2179 = vpop.trf.xlu0
    %v2180 = vpop.trf.xlu0
    %v2181 = vpop.trf.xlu0
    %v2182 = vpop.trf.xlu0
    %v2183 = vpop.trf.xlu0
    %v2184 = vpop.trf.xlu0
    %v2185 = vpop.trf.xlu0
    %v2186 = vpop.trf.xlu0
    %v2187 = vpop.trf.xlu0
    %v2188 = vpop.trf.xlu0
    %v2189 = vpop.trf.xlu0
    %v2190 = vpop.trf.xlu0
    %v2191 = vpop.trf.xlu0
    %v2192 = vpop.trf.xlu0
    %v2194 = vsel %vm81, %v2177, 0
    %v2197 = vsel %vm81, %v2178, 0
    %v2200 = vsel %vm81, %v2179, 0
    %v2203 = vsel %vm81, %v2180, 0
    %v2206 = vsel %vm81, %v2181, 0
    %v2209 = vsel %vm81, %v2182, 0
    %v2212 = vsel %vm81, %v2183, 0
    %v2215 = vsel %vm81, %v2184, 0
    %2217 = vmatpush.msra.mxu0 0.0
    %2218 = vmatpush.msra.mxu0 0.0
    %2219 = vmatpush.msra.mxu0 0.0
    %2220 = vmatpush.msra.mxu0 0.0
    %2221 = vmatpush.msra.mxu0 0.0
    %2222 = vmatpush.msra.mxu0 0.0
    %2223 = vmatpush.msra.mxu0 0.0
    %2224 = vmatpush.msra.mxu0 0.0
    %2225 = vmatpush.msra.mxu0 0.0
    %2226 = vmatpush.msra.mxu0 0.0
    %2227 = vmatpush.msra.mxu0 0.0
    %2228 = vmatpush.msra.mxu0 0.0
    %2229 = vmatpush.msra.mxu0 0.0
    %2230 = vmatpush.msra.mxu0 0.0
    %2231 = vmatpush.msra.mxu0 0.0
    %2232 = vmatpush.msra.mxu0 %v2100
    %2233 = vmatmul.f32.gmra.mxu0 %v2194
    %v2234 = vpop.f32.mrf.mxu0
    %v2235 = vadd.f32 0.0, %v2234
    %2236 = vmatmul.f32.gmra.mxu0 %v2197
    %v2237 = vpop.f32.mrf.mxu0
    %v2238 = vadd.f32 0.0, %v2237
    %2239 = vmatmul.f32.gmra.mxu0 %v2200
    %v2240 = vpop.f32.mrf.mxu0
    %v2241 = vadd.f32 0.0, %v2240
    %2242 = vmatmul.f32.gmra.mxu0 %v2203
    %v2243 = vpop.f32.mrf.mxu0
    %v2244 = vadd.f32 0.0, %v2243
    %2245 = vmatmul.f32.gmra.mxu0 %v2206
    %v2246 = vpop.f32.mrf.mxu0
    %v2247 = vadd.f32 0.0, %v2246
    %2248 = vmatmul.f32.gmra.mxu0 %v2209
    %v2249 = vpop.f32.mrf.mxu0
    %v2250 = vadd.f32 0.0, %v2249
    %2251 = vmatmul.f32.gmra.mxu0 %v2212
    %v2252 = vpop.f32.mrf.mxu0
    %v2253 = vadd.f32 0.0, %v2252
    %2254 = vmatmul.f32.gmra.mxu0 %v2215
    %v2255 = vpop.f32.mrf.mxu0
    %v2256 = vadd.f32 0.0, %v2255
    %2257 = vdwg.mxu0
    %v2259 = vsel %vm147, %v2160, 0
    %2261 = vmatpush.msra.mxu0 0.0
    %2262 = vmatpush.msra.mxu0 0.0
    %2263 = vmatpush.msra.mxu0 0.0
    %2264 = vmatpush.msra.mxu0 0.0
    %2265 = vmatpush.msra.mxu0 0.0
    %2266 = vmatpush.msra.mxu0 0.0
    %2267 = vmatpush.msra.mxu0 0.0
    %2268 = vmatpush.msra.mxu0 0.0
    %2269 = vmatpush.msra.mxu0 %v48
    %2270 = vmatpush.msra.mxu0 %v47
    %2271 = vmatpush.msra.mxu0 %v46
    %2272 = vmatpush.msra.mxu0 %v45
    %2273 = vmatpush.msra.mxu0 %v44
    %2274 = vmatpush.msra.mxu0 %v43
    %2275 = vmatpush.msra.mxu0 %v42
    %2276 = vmatpush.msra.mxu0 %v41
    %2277 = vmatmul.f32.gmra.mxu0 %v2259
    %v2278 = vpop.f32.mrf.mxu0
    %v2279 = vadd.f32 0.0, %v2278
    %2280 = vdwg.mxu0
    %v2282 = vsel %vm171, %v2100, 0
    %2284 = vmatpush.xpose.msra.mxu0 0.0
    %2285 = vmatpush.xpose.msra.mxu0 0.0
    %2286 = vmatpush.xpose.msra.mxu0 0.0
    %2287 = vmatpush.xpose.msra.mxu0 0.0
    %2288 = vmatpush.xpose.msra.mxu0 0.0
    %2289 = vmatpush.xpose.msra.mxu0 0.0
    %2290 = vmatpush.xpose.msra.mxu0 0.0
    %2291 = vmatpush.xpose.msra.mxu0 0.0
    %2292 = vmatpush.xpose.msra.mxu0 %v1657
    %2293 = vmatpush.xpose.msra.mxu0 %v1654
    %2294 = vmatpush.xpose.msra.mxu0 %v1651
    %2295 = vmatpush.xpose.msra.mxu0 %v1648
    %2296 = vmatpush.xpose.msra.mxu0 %v1645
    %2297 = vmatpush.xpose.msra.mxu0 %v1642
    %2298 = vmatpush.xpose.msra.mxu0 %v1639
    %2299 = vmatpush.xpose.msra.mxu0 %v1636
    %2300 = vmatmul.f32.gmra.mxu0 %v2282
    %v2301 = vpop.f32.mrf.mxu0
    %v2302 = vadd.f32 0.0, %v2301
    %2303 = vdwg.mxu0
    %2304 = vmatpush.msra.mxu0 0.0
    %2305 = vmatpush.msra.mxu0 0.0
    %2306 = vmatpush.msra.mxu0 0.0
    %2307 = vmatpush.msra.mxu0 0.0
    %2308 = vmatpush.msra.mxu0 0.0
    %2309 = vmatpush.msra.mxu0 0.0
    %2310 = vmatpush.msra.mxu0 0.0
    %2311 = vmatpush.msra.mxu0 0.0
    %2312 = vmatpush.msra.mxu0 %v2256
    %2313 = vmatpush.msra.mxu0 %v2253
    %2314 = vmatpush.msra.mxu0 %v2250
    %2315 = vmatpush.msra.mxu0 %v2247
    %2316 = vmatpush.msra.mxu0 %v2244
    %2317 = vmatpush.msra.mxu0 %v2241
    %2318 = vmatpush.msra.mxu0 %v2238
    %2319 = vmatpush.msra.mxu0 %v2235
    %2320 = vmatmul.f32.gmra.mxu0 %v2259
    %v2321 = vpop.f32.mrf.mxu0
    %v2322 = vadd.f32 2e-08, %v2321
    %2323 = vdwg.mxu0
    %v2324 = vrcp.pop %v2322
    %v2325 = vmul.f32 %v2322, %v2324
    %v2326 = vsub.f32 1.0, %v2325
    %v2327 = vmul.f32 %v2324, %v2326
    %v2328 = vadd.f32 %v2324, %v2327
    %vm2329 = vweird.f32 %v2322
    %vm2330 = vweird.f32 %v2324
    %vm2331 = vmor %vm2329, %vm2330
    %v2332 = vsel %vm2331, %v2324, %v2328
    %v2333 = vand.u32 2147483647, %v2322
    %vm2334 = vcmp.eq.f32.partialorder %v2333, 8.507059e+37
    %v2335 = vand.u32 %v2322, 2147483648
    %v2336 = vor.u32 1.1754944e-38, %v2335
    %v2337 = vsel %vm2334, %v2336, %v2332
    %v2338 = vmul.f32 %v2279, %v2337
    %v2339 = vmul.f32 %v2100, %v2338
    %v2341 = vsel %vm171, %v2235, 0
    %v2344 = vsel %vm171, %v2238, 0
    %v2347 = vsel %vm171, %v2241, 0
    %v2350 = vsel %vm171, %v2244, 0
    %v2353 = vsel %vm171, %v2247, 0
    %v2356 = vsel %vm171, %v2250, 0
    %v2359 = vsel %vm171, %v2253, 0
    %v2362 = vsel %vm171, %v2256, 0
    %2364 = vmatpush.xpose.msra.mxu0 0.0
    %2365 = vmatpush.xpose.msra.mxu0 0.0
    %2366 = vmatpush.xpose.msra.mxu0 0.0
    %2367 = vmatpush.xpose.msra.mxu0 0.0
    %2368 = vmatpush.xpose.msra.mxu0 0.0
    %2369 = vmatpush.xpose.msra.mxu0 0.0
    %2370 = vmatpush.xpose.msra.mxu0 0.0
    %2371 = vmatpush.xpose.msra.mxu0 0.0
    %2372 = vmatpush.xpose.msra.mxu0 %v2362
    %2373 = vmatpush.xpose.msra.mxu0 %v2359
    %2374 = vmatpush.xpose.msra.mxu0 %v2356
    %2375 = vmatpush.xpose.msra.mxu0 %v2353
    %2376 = vmatpush.xpose.msra.mxu0 %v2350
    %2377 = vmatpush.xpose.msra.mxu0 %v2347
    %2378 = vmatpush.xpose.msra.mxu0 %v2344
    %2379 = vmatpush.xpose.msra.mxu0 %v2341
    %2380 = vmatmul.f32.gmra.mxu0 %v2282
    %v2381 = vpop.f32.mrf.mxu0
    %v2382 = vadd.f32 2e-08, %v2381
    %2383 = vdwg.mxu0
    %v2384 = vrcp.pop %v2382
    %v2385 = vmul.f32 %v2382, %v2384
    %v2386 = vsub.f32 1.0, %v2385
    %v2387 = vmul.f32 %v2384, %v2386
    %v2388 = vadd.f32 %v2384, %v2387
    %vm2389 = vweird.f32 %v2382
    %vm2390 = vweird.f32 %v2384
    %vm2391 = vmor %vm2389, %vm2390
    %v2392 = vsel %vm2391, %v2384, %v2388
    %v2393 = vand.u32 2147483647, %v2382
    %vm2394 = vcmp.eq.f32.partialorder %v2393, 8.507059e+37
    %v2395 = vand.u32 %v2382, 2147483648
    %v2396 = vor.u32 1.1754944e-38, %v2395
    %v2397 = vsel %vm2394, %v2396, %v2392
    %v2398 = vmul.f32 %v2302, %v2397
    %v2399 = vmul.f32 %v2160, %v2398
    %2400 = vxpose.xlu0.b32.start [1/16] %v2399, 128
    %2401 = vxpose.xlu0.b32.cont [2/16] 0.0, 128
    %2402 = vxpose.xlu0.b32.cont [3/16] 0.0, 128
    %2403 = vxpose.xlu0.b32.cont [4/16] 0.0, 128
    %2404 = vxpose.xlu0.b32.cont [5/16] 0.0, 128
    %2405 = vxpose.xlu0.b32.cont [6/16] 0.0, 128
    %2406 = vxpose.xlu0.b32.cont [7/16] 0.0, 128
    %2407 = vxpose.xlu0.b32.cont [8/16] 0.0, 128
    %2408 = vxpose.xlu0.b32.cont [9/16] 0.0, 128
    %2409 = vxpose.xlu0.b32.cont [10/16] 0.0, 128
    %2410 = vxpose.xlu0.b32.cont [11/16] 0.0, 128
    %2411 = vxpose.xlu0.b32.cont [12/16] 0.0, 128
    %2412 = vxpose.xlu0.b32.cont [13/16] 0.0, 128
    %2413 = vxpose.xlu0.b32.cont [14/16] 0.0, 128
    %2414 = vxpose.xlu0.b32.cont [15/16] 0.0, 128
    %2415 = vxpose.xlu0.b32.end [16/16] 0.0, 128
    %v2416 = vpop.trf.xlu0
    %v2417 = vpop.trf.xlu0
    %v2418 = vpop.trf.xlu0
    %v2419 = vpop.trf.xlu0
    %v2420 = vpop.trf.xlu0
    %v2421 = vpop.trf.xlu0
    %v2422 = vpop.trf.xlu0
    %v2423 = vpop.trf.xlu0
    %v2424 = vpop.trf.xlu0
    %v2425 = vpop.trf.xlu0
    %v2426 = vpop.trf.xlu0
    %v2427 = vpop.trf.xlu0
    %v2428 = vpop.trf.xlu0
    %v2429 = vpop.trf.xlu0
    %v2430 = vpop.trf.xlu0
    %v2431 = vpop.trf.xlu0
    %v2433 = vsel %vm81, %v2416, 0
    %v2436 = vsel %vm81, %v2417, 0
    %v2439 = vsel %vm81, %v2418, 0
    %v2442 = vsel %vm81, %v2419, 0
    %v2445 = vsel %vm81, %v2420, 0
    %v2448 = vsel %vm81, %v2421, 0
    %v2451 = vsel %vm81, %v2422, 0
    %v2454 = vsel %vm81, %v2423, 0
    %2456 = vmatpush.msra.mxu0 0.0
    %2457 = vmatpush.msra.mxu0 0.0
    %2458 = vmatpush.msra.mxu0 0.0
    %2459 = vmatpush.msra.mxu0 0.0
    %2460 = vmatpush.msra.mxu0 0.0
    %2461 = vmatpush.msra.mxu0 0.0
    %2462 = vmatpush.msra.mxu0 0.0
    %2463 = vmatpush.msra.mxu0 0.0
    %2464 = vmatpush.msra.mxu0 0.0
    %2465 = vmatpush.msra.mxu0 0.0
    %2466 = vmatpush.msra.mxu0 0.0
    %2467 = vmatpush.msra.mxu0 0.0
    %2468 = vmatpush.msra.mxu0 0.0
    %2469 = vmatpush.msra.mxu0 0.0
    %2470 = vmatpush.msra.mxu0 0.0
    %2471 = vmatpush.msra.mxu0 %v2339
    %2472 = vmatmul.f32.gmra.mxu0 %v2433
    %v2473 = vpop.f32.mrf.mxu0
    %v2474 = vadd.f32 0.0, %v2473
    %2475 = vmatmul.f32.gmra.mxu0 %v2436
    %v2476 = vpop.f32.mrf.mxu0
    %v2477 = vadd.f32 0.0, %v2476
    %2478 = vmatmul.f32.gmra.mxu0 %v2439
    %v2479 = vpop.f32.mrf.mxu0
    %v2480 = vadd.f32 0.0, %v2479
    %2481 = vmatmul.f32.gmra.mxu0 %v2442
    %v2482 = vpop.f32.mrf.mxu0
    %v2483 = vadd.f32 0.0, %v2482
    %2484 = vmatmul.f32.gmra.mxu0 %v2445
    %v2485 = vpop.f32.mrf.mxu0
    %v2486 = vadd.f32 0.0, %v2485
    %2487 = vmatmul.f32.gmra.mxu0 %v2448
    %v2488 = vpop.f32.mrf.mxu0
    %v2489 = vadd.f32 0.0, %v2488
    %2490 = vmatmul.f32.gmra.mxu0 %v2451
    %v2491 = vpop.f32.mrf.mxu0
    %v2492 = vadd.f32 0.0, %v2491
    %2493 = vmatmul.f32.gmra.mxu0 %v2454
    %v2494 = vpop.f32.mrf.mxu0
    %v2495 = vadd.f32 0.0, %v2494
    %2496 = vdwg.mxu0
    %v2498 = vsel %vm147, %v2399, 0
    %2500 = vmatpush.msra.mxu0 0.0
    %2501 = vmatpush.msra.mxu0 0.0
    %2502 = vmatpush.msra.mxu0 0.0
    %2503 = vmatpush.msra.mxu0 0.0
    %2504 = vmatpush.msra.mxu0 0.0
    %2505 = vmatpush.msra.mxu0 0.0
    %2506 = vmatpush.msra.mxu0 0.0
    %2507 = vmatpush.msra.mxu0 0.0
    %2508 = vmatpush.msra.mxu0 %v48
    %2509 = vmatpush.msra.mxu0 %v47
    %2510 = vmatpush.msra.mxu0 %v46
    %2511 = vmatpush.msra.mxu0 %v45
    %2512 = vmatpush.msra.mxu0 %v44
    %2513 = vmatpush.msra.mxu0 %v43
    %2514 = vmatpush.msra.mxu0 %v42
    %2515 = vmatpush.msra.mxu0 %v41
    %2516 = vmatmul.f32.gmra.mxu0 %v2498
    %v2517 = vpop.f32.mrf.mxu0
    %v2518 = vadd.f32 0.0, %v2517
    %2519 = vdwg.mxu0
    %v2521 = vsel %vm171, %v2339, 0
    %2523 = vmatpush.xpose.msra.mxu0 0.0
    %2524 = vmatpush.xpose.msra.mxu0 0.0
    %2525 = vmatpush.xpose.msra.mxu0 0.0
    %2526 = vmatpush.xpose.msra.mxu0 0.0
    %2527 = vmatpush.xpose.msra.mxu0 0.0
    %2528 = vmatpush.xpose.msra.mxu0 0.0
    %2529 = vmatpush.xpose.msra.mxu0 0.0
    %2530 = vmatpush.xpose.msra.mxu0 0.0
    %2531 = vmatpush.xpose.msra.mxu0 %v1657
    %2532 = vmatpush.xpose.msra.mxu0 %v1654
    %2533 = vmatpush.xpose.msra.mxu0 %v1651
    %2534 = vmatpush.xpose.msra.mxu0 %v1648
    %2535 = vmatpush.xpose.msra.mxu0 %v1645
    %2536 = vmatpush.xpose.msra.mxu0 %v1642
    %2537 = vmatpush.xpose.msra.mxu0 %v1639
    %2538 = vmatpush.xpose.msra.mxu0 %v1636
    %2539 = vmatmul.f32.gmra.mxu0 %v2521
    %v2540 = vpop.f32.mrf.mxu0
    %v2541 = vadd.f32 0.0, %v2540
    %2542 = vdwg.mxu0
    %2543 = vmatpush.msra.mxu0 0.0
    %2544 = vmatpush.msra.mxu0 0.0
    %2545 = vmatpush.msra.mxu0 0.0
    %2546 = vmatpush.msra.mxu0 0.0
    %2547 = vmatpush.msra.mxu0 0.0
    %2548 = vmatpush.msra.mxu0 0.0
    %2549 = vmatpush.msra.mxu0 0.0
    %2550 = vmatpush.msra.mxu0 0.0
    %2551 = vmatpush.msra.mxu0 %v2495
    %2552 = vmatpush.msra.mxu0 %v2492
    %2553 = vmatpush.msra.mxu0 %v2489
    %2554 = vmatpush.msra.mxu0 %v2486
    %2555 = vmatpush.msra.mxu0 %v2483
    %2556 = vmatpush.msra.mxu0 %v2480
    %2557 = vmatpush.msra.mxu0 %v2477
    %2558 = vmatpush.msra.mxu0 %v2474
    %2559 = vmatmul.f32.gmra.mxu0 %v2498
    %v2560 = vpop.f32.mrf.mxu0
    %v2561 = vadd.f32 2e-08, %v2560
    %2562 = vdwg.mxu0
    %v2563 = vrcp.pop %v2561
    %v2564 = vmul.f32 %v2561, %v2563
    %v2565 = vsub.f32 1.0, %v2564
    %v2566 = vmul.f32 %v2563, %v2565
    %v2567 = vadd.f32 %v2563, %v2566
    %vm2568 = vweird.f32 %v2561
    %vm2569 = vweird.f32 %v2563
    %vm2570 = vmor %vm2568, %vm2569
    %v2571 = vsel %vm2570, %v2563, %v2567
    %v2572 = vand.u32 2147483647, %v2561
    %vm2573 = vcmp.eq.f32.partialorder %v2572, 8.507059e+37
    %v2574 = vand.u32 %v2561, 2147483648
    %v2575 = vor.u32 1.1754944e-38, %v2574
    %v2576 = vsel %vm2573, %v2575, %v2571
    %v2577 = vmul.f32 %v2518, %v2576
    %v2578 = vmul.f32 %v2339, %v2577
    %v2580 = vsel %vm171, %v2474, 0
    %v2583 = vsel %vm171, %v2477, 0
    %v2586 = vsel %vm171, %v2480, 0
    %v2589 = vsel %vm171, %v2483, 0
    %v2592 = vsel %vm171, %v2486, 0
    %v2595 = vsel %vm171, %v2489, 0
    %v2598 = vsel %vm171, %v2492, 0
    %v2601 = vsel %vm171, %v2495, 0
    %2603 = vmatpush.xpose.msra.mxu0 0.0
    %2604 = vmatpush.xpose.msra.mxu0 0.0
    %2605 = vmatpush.xpose.msra.mxu0 0.0
    %2606 = vmatpush.xpose.msra.mxu0 0.0
    %2607 = vmatpush.xpose.msra.mxu0 0.0
    %2608 = vmatpush.xpose.msra.mxu0 0.0
    %2609 = vmatpush.xpose.msra.mxu0 0.0
    %2610 = vmatpush.xpose.msra.mxu0 0.0
    %2611 = vmatpush.xpose.msra.mxu0 %v2601
    %2612 = vmatpush.xpose.msra.mxu0 %v2598
    %2613 = vmatpush.xpose.msra.mxu0 %v2595
    %2614 = vmatpush.xpose.msra.mxu0 %v2592
    %2615 = vmatpush.xpose.msra.mxu0 %v2589
    %2616 = vmatpush.xpose.msra.mxu0 %v2586
    %2617 = vmatpush.xpose.msra.mxu0 %v2583
    %2618 = vmatpush.xpose.msra.mxu0 %v2580
    %2619 = vmatmul.f32.gmra.mxu0 %v2521
    %v2620 = vpop.f32.mrf.mxu0
    %v2621 = vadd.f32 2e-08, %v2620
    %2622 = vdwg.mxu0
    %v2623 = vrcp.pop %v2621
    %v2624 = vmul.f32 %v2621, %v2623
    %v2625 = vsub.f32 1.0, %v2624
    %v2626 = vmul.f32 %v2623, %v2625
    %v2627 = vadd.f32 %v2623, %v2626
    %vm2628 = vweird.f32 %v2621
    %vm2629 = vweird.f32 %v2623
    %vm2630 = vmor %vm2628, %vm2629
    %v2631 = vsel %vm2630, %v2623, %v2627
    %v2632 = vand.u32 2147483647, %v2621
    %vm2633 = vcmp.eq.f32.partialorder %v2632, 8.507059e+37
    %v2634 = vand.u32 %v2621, 2147483648
    %v2635 = vor.u32 1.1754944e-38, %v2634
    %v2636 = vsel %vm2633, %v2635, %v2631
    %v2637 = vmul.f32 %v2541, %v2636
    %v2638 = vmul.f32 %v2399, %v2637
    %2639 = vxpose.xlu0.b32.start [1/16] %v2638, 128
    %2640 = vxpose.xlu0.b32.cont [2/16] 0.0, 128
    %2641 = vxpose.xlu0.b32.cont [3/16] 0.0, 128
    %2642 = vxpose.xlu0.b32.cont [4/16] 0.0, 128
    %2643 = vxpose.xlu0.b32.cont [5/16] 0.0, 128
    %2644 = vxpose.xlu0.b32.cont [6/16] 0.0, 128
    %2645 = vxpose.xlu0.b32.cont [7/16] 0.0, 128
    %2646 = vxpose.xlu0.b32.cont [8/16] 0.0, 128
    %2647 = vxpose.xlu0.b32.cont [9/16] 0.0, 128
    %2648 = vxpose.xlu0.b32.cont [10/16] 0.0, 128
    %2649 = vxpose.xlu0.b32.cont [11/16] 0.0, 128
    %2650 = vxpose.xlu0.b32.cont [12/16] 0.0, 128
    %2651 = vxpose.xlu0.b32.cont [13/16] 0.0, 128
    %2652 = vxpose.xlu0.b32.cont [14/16] 0.0, 128
    %2653 = vxpose.xlu0.b32.cont [15/16] 0.0, 128
    %2654 = vxpose.xlu0.b32.end [16/16] 0.0, 128
    %v2655 = vpop.trf.xlu0
    %v2656 = vpop.trf.xlu0
    %v2657 = vpop.trf.xlu0
    %v2658 = vpop.trf.xlu0
    %v2659 = vpop.trf.xlu0
    %v2660 = vpop.trf.xlu0
    %v2661 = vpop.trf.xlu0
    %v2662 = vpop.trf.xlu0
    %v2663 = vpop.trf.xlu0
    %v2664 = vpop.trf.xlu0
    %v2665 = vpop.trf.xlu0
    %v2666 = vpop.trf.xlu0
    %v2667 = vpop.trf.xlu0
    %v2668 = vpop.trf.xlu0
    %v2669 = vpop.trf.xlu0
    %v2670 = vpop.trf.xlu0
    %v2672 = vsel %vm81, %v2655, 0
    %v2675 = vsel %vm81, %v2656, 0
    %v2678 = vsel %vm81, %v2657, 0
    %v2681 = vsel %vm81, %v2658, 0
    %v2684 = vsel %vm81, %v2659, 0
    %v2687 = vsel %vm81, %v2660, 0
    %v2690 = vsel %vm81, %v2661, 0
    %v2693 = vsel %vm81, %v2662, 0
    %2695 = vmatpush.msra.mxu0 0.0
    %2696 = vmatpush.msra.mxu0 0.0
    %2697 = vmatpush.msra.mxu0 0.0
    %2698 = vmatpush.msra.mxu0 0.0
    %2699 = vmatpush.msra.mxu0 0.0
    %2700 = vmatpush.msra.mxu0 0.0
    %2701 = vmatpush.msra.mxu0 0.0
    %2702 = vmatpush.msra.mxu0 0.0
    %2703 = vmatpush.msra.mxu0 0.0
    %2704 = vmatpush.msra.mxu0 0.0
    %2705 = vmatpush.msra.mxu0 0.0
    %2706 = vmatpush.msra.mxu0 0.0
    %2707 = vmatpush.msra.mxu0 0.0
    %2708 = vmatpush.msra.mxu0 0.0
    %2709 = vmatpush.msra.mxu0 0.0
    %2710 = vmatpush.msra.mxu0 %v2578
    %2711 = vmatmul.f32.gmra.mxu0 %v2672
    %v2712 = vpop.f32.mrf.mxu0
    %v2713 = vadd.f32 0.0, %v2712
    %2714 = vmatmul.f32.gmra.mxu0 %v2675
    %v2715 = vpop.f32.mrf.mxu0
    %v2716 = vadd.f32 0.0, %v2715
    %2717 = vmatmul.f32.gmra.mxu0 %v2678
    %v2718 = vpop.f32.mrf.mxu0
    %v2719 = vadd.f32 0.0, %v2718
    %2720 = vmatmul.f32.gmra.mxu0 %v2681
    %v2721 = vpop.f32.mrf.mxu0
    %v2722 = vadd.f32 0.0, %v2721
    %2723 = vmatmul.f32.gmra.mxu0 %v2684
    %v2724 = vpop.f32.mrf.mxu0
    %v2725 = vadd.f32 0.0, %v2724
    %2726 = vmatmul.f32.gmra.mxu0 %v2687
    %v2727 = vpop.f32.mrf.mxu0
    %v2728 = vadd.f32 0.0, %v2727
    %2729 = vmatmul.f32.gmra.mxu0 %v2690
    %v2730 = vpop.f32.mrf.mxu0
    %v2731 = vadd.f32 0.0, %v2730
    %2732 = vmatmul.f32.gmra.mxu0 %v2693
    %v2733 = vpop.f32.mrf.mxu0
    %v2734 = vadd.f32 0.0, %v2733
    %2735 = vdwg.mxu0
    %v2737 = vsel %vm147, %v2638, 0
    %2739 = vmatpush.msra.mxu0 0.0
    %2740 = vmatpush.msra.mxu0 0.0
    %2741 = vmatpush.msra.mxu0 0.0
    %2742 = vmatpush.msra.mxu0 0.0
    %2743 = vmatpush.msra.mxu0 0.0
    %2744 = vmatpush.msra.mxu0 0.0
    %2745 = vmatpush.msra.mxu0 0.0
    %2746 = vmatpush.msra.mxu0 0.0
    %2747 = vmatpush.msra.mxu0 %v48
    %2748 = vmatpush.msra.mxu0 %v47
    %2749 = vmatpush.msra.mxu0 %v46
    %2750 = vmatpush.msra.mxu0 %v45
    %2751 = vmatpush.msra.mxu0 %v44
    %2752 = vmatpush.msra.mxu0 %v43
    %2753 = vmatpush.msra.mxu0 %v42
    %2754 = vmatpush.msra.mxu0 %v41
    %2755 = vmatmul.f32.gmra.mxu0 %v2737
    %v2756 = vpop.f32.mrf.mxu0
    %v2757 = vadd.f32 0.0, %v2756
    %2758 = vdwg.mxu0
    %v2760 = vsel %vm171, %v2578, 0
    %2762 = vmatpush.xpose.msra.mxu0 0.0
    %2763 = vmatpush.xpose.msra.mxu0 0.0
    %2764 = vmatpush.xpose.msra.mxu0 0.0
    %2765 = vmatpush.xpose.msra.mxu0 0.0
    %2766 = vmatpush.xpose.msra.mxu0 0.0
    %2767 = vmatpush.xpose.msra.mxu0 0.0
    %2768 = vmatpush.xpose.msra.mxu0 0.0
    %2769 = vmatpush.xpose.msra.mxu0 0.0
    %2770 = vmatpush.xpose.msra.mxu0 %v1657
    %2771 = vmatpush.xpose.msra.mxu0 %v1654
    %2772 = vmatpush.xpose.msra.mxu0 %v1651
    %2773 = vmatpush.xpose.msra.mxu0 %v1648
    %2774 = vmatpush.xpose.msra.mxu0 %v1645
    %2775 = vmatpush.xpose.msra.mxu0 %v1642
    %2776 = vmatpush.xpose.msra.mxu0 %v1639
    %2777 = vmatpush.xpose.msra.mxu0 %v1636
    %2778 = vmatmul.f32.gmra.mxu0 %v2760
    %v2779 = vpop.f32.mrf.mxu0
    %v2780 = vadd.f32 0.0, %v2779
    %2781 = vdwg.mxu0
    %2782 = vmatpush.msra.mxu0 0.0
    %2783 = vmatpush.msra.mxu0 0.0
    %2784 = vmatpush.msra.mxu0 0.0
    %2785 = vmatpush.msra.mxu0 0.0
    %2786 = vmatpush.msra.mxu0 0.0
    %2787 = vmatpush.msra.mxu0 0.0
    %2788 = vmatpush.msra.mxu0 0.0
    %2789 = vmatpush.msra.mxu0 0.0
    %2790 = vmatpush.msra.mxu0 %v2734
    %2791 = vmatpush.msra.mxu0 %v2731
    %2792 = vmatpush.msra.mxu0 %v2728
    %2793 = vmatpush.msra.mxu0 %v2725
    %2794 = vmatpush.msra.mxu0 %v2722
    %2795 = vmatpush.msra.mxu0 %v2719
    %2796 = vmatpush.msra.mxu0 %v2716
    %2797 = vmatpush.msra.mxu0 %v2713
    %2798 = vmatmul.f32.gmra.mxu0 %v2737
    %v2799 = vpop.f32.mrf.mxu0
    %v2800 = vadd.f32 2e-08, %v2799
    %2801 = vdwg.mxu0
    %v2802 = vrcp.pop %v2800
    %v2803 = vmul.f32 %v2800, %v2802
    %v2804 = vsub.f32 1.0, %v2803
    %v2805 = vmul.f32 %v2802, %v2804
    %v2806 = vadd.f32 %v2802, %v2805
    %vm2807 = vweird.f32 %v2800
    %vm2808 = vweird.f32 %v2802
    %vm2809 = vmor %vm2807, %vm2808
    %v2810 = vsel %vm2809, %v2802, %v2806
    %v2811 = vand.u32 2147483647, %v2800
    %vm2812 = vcmp.eq.f32.partialorder %v2811, 8.507059e+37
    %v2813 = vand.u32 %v2800, 2147483648
    %v2814 = vor.u32 1.1754944e-38, %v2813
    %v2815 = vsel %vm2812, %v2814, %v2810
    %v2816 = vmul.f32 %v2757, %v2815
    %v2817 = vmul.f32 %v2578, %v2816
    %v2819 = vsel %vm171, %v2713, 0
    %v2822 = vsel %vm171, %v2716, 0
    %v2825 = vsel %vm171, %v2719, 0
    %v2828 = vsel %vm171, %v2722, 0
    %v2831 = vsel %vm171, %v2725, 0
    %v2834 = vsel %vm171, %v2728, 0
    %v2837 = vsel %vm171, %v2731, 0
    %v2840 = vsel %vm171, %v2734, 0
    %2842 = vmatpush.xpose.msra.mxu0 0.0
    %2843 = vmatpush.xpose.msra.mxu0 0.0
    %2844 = vmatpush.xpose.msra.mxu0 0.0
    %2845 = vmatpush.xpose.msra.mxu0 0.0
    %2846 = vmatpush.xpose.msra.mxu0 0.0
    %2847 = vmatpush.xpose.msra.mxu0 0.0
    %2848 = vmatpush.xpose.msra.mxu0 0.0
    %2849 = vmatpush.xpose.msra.mxu0 0.0
    %2850 = vmatpush.xpose.msra.mxu0 %v2840
    %2851 = vmatpush.xpose.msra.mxu0 %v2837
    %2852 = vmatpush.xpose.msra.mxu0 %v2834
    %2853 = vmatpush.xpose.msra.mxu0 %v2831
    %2854 = vmatpush.xpose.msra.mxu0 %v2828
    %2855 = vmatpush.xpose.msra.mxu0 %v2825
    %2856 = vmatpush.xpose.msra.mxu0 %v2822
    %2857 = vmatpush.xpose.msra.mxu0 %v2819
    %2858 = vmatmul.f32.gmra.mxu0 %v2760
    %v2859 = vpop.f32.mrf.mxu0
    %v2860 = vadd.f32 2e-08, %v2859
    %2861 = vdwg.mxu0
    %v2862 = vrcp.pop %v2860
    %v2863 = vmul.f32 %v2860, %v2862
    %v2864 = vsub.f32 1.0, %v2863
    %v2865 = vmul.f32 %v2862, %v2864
    %v2866 = vadd.f32 %v2862, %v2865
    %vm2867 = vweird.f32 %v2860
    %vm2868 = vweird.f32 %v2862
    %vm2869 = vmor %vm2867, %vm2868
    %v2870 = vsel %vm2869, %v2862, %v2866
    %v2871 = vand.u32 2147483647, %v2860
    %vm2872 = vcmp.eq.f32.partialorder %v2871, 8.507059e+37
    %v2873 = vand.u32 %v2860, 2147483648
    %v2874 = vor.u32 1.1754944e-38, %v2873
    %v2875 = vsel %vm2872, %v2874, %v2870
    %v2876 = vmul.f32 %v2780, %v2875
    %v2877 = vmul.f32 %v2638, %v2876
    %2878 = vxpose.xlu0.b32.start [1/16] %v2877, 128
    %2879 = vxpose.xlu0.b32.cont [2/16] 0.0, 128
    %2880 = vxpose.xlu0.b32.cont [3/16] 0.0, 128
    %2881 = vxpose.xlu0.b32.cont [4/16] 0.0, 128
    %2882 = vxpose.xlu0.b32.cont [5/16] 0.0, 128
    %2883 = vxpose.xlu0.b32.cont [6/16] 0.0, 128
    %2884 = vxpose.xlu0.b32.cont [7/16] 0.0, 128
    %2885 = vxpose.xlu0.b32.cont [8/16] 0.0, 128
    %2886 = vxpose.xlu0.b32.cont [9/16] 0.0, 128
    %2887 = vxpose.xlu0.b32.cont [10/16] 0.0, 128
    %2888 = vxpose.xlu0.b32.cont [11/16] 0.0, 128
    %2889 = vxpose.xlu0.b32.cont [12/16] 0.0, 128
    %2890 = vxpose.xlu0.b32.cont [13/16] 0.0, 128
    %2891 = vxpose.xlu0.b32.cont [14/16] 0.0, 128
    %2892 = vxpose.xlu0.b32.cont [15/16] 0.0, 128
    %2893 = vxpose.xlu0.b32.end [16/16] 0.0, 128
    %v2894 = vpop.trf.xlu0
    %v2895 = vpop.trf.xlu0
    %v2896 = vpop.trf.xlu0
    %v2897 = vpop.trf.xlu0
    %v2898 = vpop.trf.xlu0
    %v2899 = vpop.trf.xlu0
    %v2900 = vpop.trf.xlu0
    %v2901 = vpop.trf.xlu0
    %v2902 = vpop.trf.xlu0
    %v2903 = vpop.trf.xlu0
    %v2904 = vpop.trf.xlu0
    %v2905 = vpop.trf.xlu0
    %v2906 = vpop.trf.xlu0
    %v2907 = vpop.trf.xlu0
    %v2908 = vpop.trf.xlu0
    %v2909 = vpop.trf.xlu0
    %v2911 = vsel %vm81, %v2894, 0
    %v2914 = vsel %vm81, %v2895, 0
    %v2917 = vsel %vm81, %v2896, 0
    %v2920 = vsel %vm81, %v2897, 0
    %v2923 = vsel %vm81, %v2898, 0
    %v2926 = vsel %vm81, %v2899, 0
    %v2929 = vsel %vm81, %v2900, 0
    %v2932 = vsel %vm81, %v2901, 0
    %2934 = vmatpush.msra.mxu0 0.0
    %2935 = vmatpush.msra.mxu0 0.0
    %2936 = vmatpush.msra.mxu0 0.0
    %2937 = vmatpush.msra.mxu0 0.0
    %2938 = vmatpush.msra.mxu0 0.0
    %2939 = vmatpush.msra.mxu0 0.0
    %2940 = vmatpush.msra.mxu0 0.0
    %2941 = vmatpush.msra.mxu0 0.0
    %2942 = vmatpush.msra.mxu0 0.0
    %2943 = vmatpush.msra.mxu0 0.0
    %2944 = vmatpush.msra.mxu0 0.0
    %2945 = vmatpush.msra.mxu0 0.0
    %2946 = vmatpush.msra.mxu0 0.0
    %2947 = vmatpush.msra.mxu0 0.0
    %2948 = vmatpush.msra.mxu0 0.0
    %2949 = vmatpush.msra.mxu0 %v2817
    %2950 = vmatmul.f32.gmra.mxu0 %v2911
    %v2951 = vpop.f32.mrf.mxu0
    %v2952 = vadd.f32 0.0, %v2951
    %2953 = vmatmul.f32.gmra.mxu0 %v2914
    %v2954 = vpop.f32.mrf.mxu0
    %v2955 = vadd.f32 0.0, %v2954
    %2956 = vmatmul.f32.gmra.mxu0 %v2917
    %v2957 = vpop.f32.mrf.mxu0
    %v2958 = vadd.f32 0.0, %v2957
    %2959 = vmatmul.f32.gmra.mxu0 %v2920
    %v2960 = vpop.f32.mrf.mxu0
    %v2961 = vadd.f32 0.0, %v2960
    %2962 = vmatmul.f32.gmra.mxu0 %v2923
    %v2963 = vpop.f32.mrf.mxu0
    %v2964 = vadd.f32 0.0, %v2963
    %2965 = vmatmul.f32.gmra.mxu0 %v2926
    %v2966 = vpop.f32.mrf.mxu0
    %v2967 = vadd.f32 0.0, %v2966
    %2968 = vmatmul.f32.gmra.mxu0 %v2929
    %v2969 = vpop.f32.mrf.mxu0
    %v2970 = vadd.f32 0.0, %v2969
    %2971 = vmatmul.f32.gmra.mxu0 %v2932
    %v2972 = vpop.f32.mrf.mxu0
    %v2973 = vadd.f32 0.0, %v2972
    %2974 = vdwg.mxu0
    %2983 = vrot.lane.b32.xlu0 %v2952, 32
    %v2984 = vpop.permute.xlu0 %2983
    %2985 = vrot.lane.b32.xlu0 %v2955, 32
    %v2986 = vpop.permute.xlu0 %2985
    %2987 = vrot.lane.b32.xlu0 %v2958, 32
    %v2988 = vpop.permute.xlu0 %2987
    %2989 = vrot.lane.b32.xlu0 %v2961, 32
    %v2990 = vpop.permute.xlu0 %2989
    %2991 = vrot.lane.b32.xlu0 %v2964, 32
    %v2992 = vpop.permute.xlu0 %2991
    %2993 = vrot.lane.b32.xlu0 %v2967, 32
    %v2994 = vpop.permute.xlu0 %2993
    %2995 = vrot.lane.b32.xlu0 %v2970, 32
    %v2996 = vpop.permute.xlu0 %2995
    %2997 = vrot.lane.b32.xlu0 %v2973, 32
    %v2998 = vpop.permute.xlu0 %2997
    %vm3007 = vcmask 523520
    %3008 = vst.msk [vmem:[#allocation2] sm:$0xff] %vm3007, %v2984
    %3009 = vst.msk [vmem:[#allocation2 + $0x8] sm:$0xff] %vm3007, %v2986
    %3010 = vst.msk [vmem:[#allocation2 + $0x10] sm:$0xff] %vm3007, %v2988
    %3011 = vst.msk [vmem:[#allocation2 + $0x18] sm:$0xff] %vm3007, %v2990
    %3012 = vst.msk [vmem:[#allocation2 + $0x20] sm:$0xff] %vm3007, %v2992
    %3013 = vst.msk [vmem:[#allocation2 + $0x28] sm:$0xff] %vm3007, %v2994
    %3014 = vst.msk [vmem:[#allocation2 + $0x30] sm:$0xff] %vm3007, %v2996
    %3015 = vst.msk [vmem:[#allocation2 + $0x38] sm:$0xff] %vm3007, %v2998
    // Predicated region
    $region14: #{tpu_custom_call.1} parent=1 // pred_check
      _
    $region15: #{tpu_custom_call.1} parent=1 // pred_check_branch
      %3017 = sbr.rel (0) target = $region17
    $region16: #{tpu_custom_call.1} parent=1 // pred_region
      %3019 = vsyncadd [#allocation3], 0
      %s3020 = sshll.u32 [#allocation2], 4
      %s3021 = int_to_ptr.vmem [resolvable:$true] %s3020
      %s3022 = sshll.u32 %s3, 4
      %s3023 = int_to_ptr.hbm [resolvable:$true] %s3022
      %3028 = dma.vmem_to_hbm [thread:$0]  %s3021, 1024, %s3023, [#allocation3], 128, 128, 8
    $region17: #{tpu_custom_call.1} parent=1 // pred_fallthru
      _
    // Predicated region
    $region18: #{tpu_custom_call.1} parent=1 // pred_check
      _
    $region19: #{tpu_custom_call.1} parent=1 // pred_check_branch
      %3030 = sbr.rel (0) target = $region21
    $region20: #{tpu_custom_call.1} parent=1 // pred_region
      %3032 = dma.done [#allocation3], 1024
    $region21: #{tpu_custom_call.1} parent=1 // pred_fallthru
      _
    %3033 = vsyncpa [#allocation3], 1

</llo_original>
